<compile_context>
chip_gen: v6e
topology: v6e:2x2x1
jax: 0.10.0
libtpu: 0.0.40
codegen_flags: <defaults>
</compile_context>

<pallas_src>
import functools

import jax
import jax.numpy as jnp
from jax.experimental import pallas as pl
from jax.experimental.pallas import tpu as pltpu

_PAD_LEFT = 8  # sublane-aligned left padding of the VMEM hidden scratch


# ----------------------------- fused kernel -----------------------------

def _inverted_residual_kernel(*refs, stride, has_expand, has_res,
                              H, W, Hout, Wout, pad_left):
    it = iter(refs)
    x_ref = next(it)
    if has_expand:
        w_exp_ref = next(it)
        b1_ref = next(it)
    w_dw_ref = next(it)
    b2_ref = next(it)
    w_pr_ref = next(it)
    b3_ref = next(it)
    w_res_ref = next(it) if has_res else None
    o_ref = next(it)
    hid_ref = next(it)

    f32 = jnp.float32
    cin = x_ref.shape[-1]
    hidden = w_dw_ref.shape[-1]
    Wp = hid_ref.shape[1]          # padded scratch width = W + 2 * pad_left

    def ds(start, size):
        # plain slice for stride 1, strided slice otherwise
        return pl.ds(start, size) if stride == 1 else pl.ds(start, size, stride)

    # Zero ONLY the halo ring of the padded scratch (the interior is fully
    # overwritten by the expand stage below).  Re-done every grid step so it
    # stays correct when the batch axis is sharded across TensorCores.  The
    # side-band stores are sublane-aligned (pad_left == 8) full-lane vst.
    hid_ref[pl.ds(0, 1), :, :] = jnp.zeros((1, Wp, hidden), f32)
    hid_ref[pl.ds(H + 1, 1), :, :] = jnp.zeros((1, Wp, hidden), f32)
    hid_ref[pl.ds(1, H), pl.ds(0, pad_left), :] = (
        jnp.zeros((H, pad_left, hidden), f32))
    hid_ref[pl.ds(1, H), pl.ds(pad_left + W, Wp - pad_left - W), :] = (
        jnp.zeros((H, Wp - pad_left - W, hidden), f32))

    x2 = x_ref[0].reshape(H * W, cin).astype(f32)

    # --- stage 1: 1x1 expand conv + folded BN + ReLU6 (MXU) ------------------
    if has_expand:
        h = jnp.dot(x2, w_exp_ref[...], preferred_element_type=f32) + b1_ref[...]
        h = jnp.clip(h, 0.0, 6.0)
    else:
        h = x2
    # Aligned store into the interior of the padded scratch (sublane offset 8).
    hid_ref[pl.ds(1, H), pl.ds(pad_left, W), :] = h.reshape(H, W, hidden)

    # --- stage 2: 3x3 depthwise conv + folded BN + ReLU6 (9-tap VPU FMA) -----
    w_dw = w_dw_ref[...]                        # (9, hidden), BN scale folded
    acc = jnp.zeros((Hout, Wout, hidden), f32)
    for k in range(9):
        kh, kw = k // 3, k % 3
        tap = hid_ref[ds(kh, Hout), ds(pad_left - 1 + kw, Wout), :]
        acc = acc + tap * w_dw[k].reshape(1, 1, hidden)
    hdw = jnp.clip(acc + b2_ref[...].reshape(1, 1, hidden), 0.0, 6.0)
    # TODO(synk): a lane-dense (Hout, Wout*hidden) layout would raise VPU lane
    # utilization for this stage; skipped since it is VMEM-resident and tiny.

    # --- stage 3: 1x1 project conv + folded BN (+ fused residual), lane-dense
    h2 = hdw.reshape(Hout * Wout, hidden)
    out = jnp.dot(h2, w_pr_ref[...], preferred_element_type=f32) + b3_ref[...]
    if has_res:
        # residual fused on the MXU: out[:, :oup] += x  (w_res = [I | 0])
        out = out + jnp.dot(x2, w_res_ref[...], preferred_element_type=f32)
    o_ref[0] = out.astype(o_ref.dtype)


# ----------------------------- module wrapper -----------------------------

class InvertedResidualPallas:
    def __init__(self, inp, oup, stride, expand_ratio, key):
        hidden = inp * expand_ratio
        self.inp, self.oup, self.stride = inp, oup, stride
        self.expand_ratio = expand_ratio
        self.hidden = hidden
        self.use_res_connect = stride == 1 and inp == oup
        self.coup_pad = ((oup + 127) // 128) * 128   # lane-dense padded cout
        self.eps = 1e-5

        def bn_init(c, k):
            kg, kb, km, kv = jax.random.split(k, 4)
            gamma = 1.0 + 0.1 * jax.random.normal(kg, (c,), jnp.float32)
            beta = 0.1 * jax.random.normal(kb, (c,), jnp.float32)
            mean = 0.1 * jax.random.normal(km, (c,), jnp.float32)
            var = 1.0 + 0.1 * jax.random.uniform(kv, (c,), jnp.float32)
            return gamma, beta, mean, var

        def fold(gamma, beta, mean, var):
            s = gamma / jnp.sqrt(var + self.eps)
            return s, beta - mean * s

        k0, k1, k2, k3, k4, k5 = jax.random.split(key, 6)

        # raw parameters (used by the pure-JAX reference)
        if expand_ratio != 1:
            self.w_expand = 0.1 * jax.random.normal(k0, (inp, hidden), jnp.float32)
            self.bn1 = bn_init(hidden, k3)
        self.w_dw = 0.1 * jax.random.normal(k1, (3, 3, hidden), jnp.float32)
        self.bn2 = bn_init(hidden, k4)
        self.w_proj = 0.1 * jax.random.normal(k2, (hidden, oup), jnp.float32)
        self.bn3 = bn_init(oup, k5)

        # BN-folded (and lane-padded) kernel parameters
        if expand_ratio != 1:
            s1, b1 = fold(*self.bn1)
            self.w_expand_f = self.w_expand * s1[None, :]
            self.b1 = b1.reshape(1, hidden)
        s2, b2 = fold(*self.bn2)
        self.w_dw_f = (self.w_dw * s2[None, None, :]).reshape(9, hidden)
        self.b2 = b2.reshape(1, hidden)
        s3, b3 = fold(*self.bn3)
        self.w_proj_f = (jnp.zeros((hidden, self.coup_pad), jnp.float32)
                         .at[:, :oup].set(self.w_proj * s3[None, :]))
        self.b3 = (jnp.zeros((1, self.coup_pad), jnp.float32)
                   .at[:, :oup].set(b3))
        if self.use_res_connect:
            self.w_res = jnp.eye(inp, self.coup_pad, dtype=jnp.float32)

    def __call__(self, x_nchw):
        N, C, H, W = x_nchw.shape
        stride = self.stride
        Hout = (H - 1) // stride + 1
        Wout = (W - 1) // stride + 1
        M = Hout * Wout
        hidden = self.hidden
        coup_pad = self.coup_pad
        has_expand = self.expand_ratio != 1
        has_res = self.use_res_connect

        x = jnp.transpose(x_nchw, (0, 2, 3, 1))  # NHWC (channels on the lanes)

        kernel = functools.partial(
            _inverted_residual_kernel, stride=stride, has_expand=has_expand,
            has_res=has_res, H=H, W=W, Hout=Hout, Wout=Wout, pad_left=_PAD_LEFT)

        in_specs = [pl.BlockSpec((1, H, W, C), lambda n: (n, 0, 0, 0))]
        args = [x]
        if has_expand:
            in_specs += [pl.BlockSpec((C, hidden), lambda n: (0, 0)),
                         pl.BlockSpec((1, hidden), lambda n: (0, 0))]
            args += [self.w_expand_f, self.b1]
        in_specs += [pl.BlockSpec((9, hidden), lambda n: (0, 0)),
                     pl.BlockSpec((1, hidden), lambda n: (0, 0)),
                     pl.BlockSpec((hidden, coup_pad), lambda n: (0, 0)),
                     pl.BlockSpec((1, coup_pad), lambda n: (0, 0))]
        args += [self.w_dw_f, self.b2, self.w_proj_f, self.b3]
        if has_res:
            in_specs += [pl.BlockSpec((C, coup_pad), lambda n: (0, 0))]
            args += [self.w_res]

        out = pl.pallas_call(
            kernel,
            out_shape=jax.ShapeDtypeStruct((N, M, coup_pad), x.dtype),
            grid=(N,),
            in_specs=in_specs,
            out_specs=pl.BlockSpec((1, M, coup_pad), lambda n: (n, 0, 0)),
            scratch_shapes=[
                pltpu.VMEM((H + 2, W + 2 * _PAD_LEFT, hidden), jnp.float32)],
            compiler_params=pltpu.CompilerParams(
                dimension_semantics=("parallel",),
                vmem_limit_bytes=32 * 1024 * 1024),
        )(*args)

        out = out[:, :, :self.oup].reshape(N, Hout, Wout, self.oup)
        return jnp.transpose(out, (0, 3, 1, 2))  # back to NCHW


# ------------------- pure-JAX reference (unfolded BN, for validation) -------------------

def reference(mod, x_nchw):
    eps = mod.eps

    def bn(h, params):
        gamma, beta, mean, var = params
        return (h - mean) / jnp.sqrt(var + eps) * gamma + beta

    x = jnp.transpose(x_nchw, (0, 2, 3, 1))
    h = x
    if mod.expand_ratio != 1:
        h = jnp.einsum("nhwc,cd->nhwd", h, mod.w_expand)
        h = jnp.clip(bn(h, mod.bn1), 0.0, 6.0)
    C = h.shape[-1]
    h = jax.lax.conv_general_dilated(
        h, mod.w_dw.reshape(3, 3, 1, C),
        window_strides=(mod.stride, mod.stride),
        padding=((1, 1), (1, 1)),
        dimension_numbers=("NHWC", "HWIO", "NHWC"),
        feature_group_count=C)
    h = jnp.clip(bn(h, mod.bn2), 0.0, 6.0)
    out = jnp.einsum("nhwc,cd->nhwd", h, mod.w_proj)
    out = bn(out, mod.bn3)
    if mod.use_res_connect:
        out = out + x
    return jnp.transpose(out, (0, 3, 1, 2))


if __name__ == "__main__":
    key = jax.random.PRNGKey(0)
    k_x1, k_p1, k_x2, k_p2, k_x3, k_p3 = jax.random.split(key, 6)

    # Test 1: expand_ratio=4, stride=1, residual connection active.
    N, Cin, H, W = 2, 8, 16, 16
    x1 = jax.random.normal(k_x1, (N, Cin, H, W), jnp.float32)
    mod1 = InvertedResidualPallas(inp=Cin, oup=Cin, stride=1, expand_ratio=4, key=k_p1)
    out1 = jax.block_until_ready(jax.jit(mod1.__call__)(x1))
    ref1 = jax.block_until_ready(reference(mod1, x1))
    assert out1.shape == ref1.shape == (N, Cin, H, W)
    err1 = float(jnp.max(jnp.abs(out1 - ref1)))
    assert jnp.allclose(out1, ref1, atol=1e-4, rtol=1e-4), err1

    # Test 2: expand_ratio=1 branch (no expand conv), stride=1, residual active.
    N2, C2, H2, W2 = 2, 16, 8, 8
    x2 = jax.random.normal(k_x2, (N2, C2, H2, W2), jnp.float32)
    mod2 = InvertedResidualPallas(inp=C2, oup=C2, stride=1, expand_ratio=1, key=k_p2)
    out2 = jax.block_until_ready(jax.jit(mod2.__call__)(x2))
    ref2 = jax.block_until_ready(reference(mod2, x2))
    assert out2.shape == ref2.shape == (N2, C2, H2, W2)
    err2 = float(jnp.max(jnp.abs(out2 - ref2)))
    assert jnp.allclose(out2, ref2, atol=1e-4, rtol=1e-4), err2

    # Test 3: inp != oup (no residual path), expand_ratio=4, stride=1.
    N3, C3, O3, H3, W3 = 2, 8, 24, 16, 16
    x3 = jax.random.normal(k_x3, (N3, C3, H3, W3), jnp.float32)
    mod3 = InvertedResidualPallas(inp=C3, oup=O3, stride=1, expand_ratio=4, key=k_p3)
    out3 = jax.block_until_ready(jax.jit(mod3.__call__)(x3))
    ref3 = jax.block_until_ready(reference(mod3, x3))
    assert out3.shape == ref3.shape == (N3, O3, H3, W3)
    err3 = float(jnp.max(jnp.abs(out3 - ref3)))
    assert jnp.allclose(out3, ref3, atol=1e-4, rtol=1e-4), err3

    print("KERNEL_OK")
</pallas_src>

<mosaic_0001>
module attributes {stable_mosaic.version = 11 : i64} {
  func.func @_inverted_residual_kernel(%arg0: i32, %arg1: memref<1x16x16x8xf32, #tpu.memory_space<vmem>>, %arg2: memref<8x32xf32, #tpu.memory_space<vmem>>, %arg3: memref<1x32xf32, #tpu.memory_space<vmem>>, %arg4: memref<9x32xf32, #tpu.memory_space<vmem>>, %arg5: memref<1x32xf32, #tpu.memory_space<vmem>>, %arg6: memref<32x128xf32, #tpu.memory_space<vmem>>, %arg7: memref<1x128xf32, #tpu.memory_space<vmem>>, %arg8: memref<8x128xf32, #tpu.memory_space<vmem>>, %arg9: memref<1x256x128xf32, #tpu.memory_space<vmem>>, %arg10: memref<18x32x32xf32, #tpu.memory_space<vmem>>) attributes {dimension_semantics = [#tpu.dimension_semantics<parallel>], iteration_bounds = array<i64: 2>, scalar_prefetch = 0 : i64, scratch_operands = 1 : i64, tpu.core_type = #tpu.core_type<tc>, window_params = [{transform_indices = @transform_0, window_bounds = array<i64: 1, 16, 16, 8>}, {pipeline_mode = #tpu.pipeline_mode<synchronous>, transform_indices = @transform_1, window_bounds = array<i64: 8, 32>}, {pipeline_mode = #tpu.pipeline_mode<synchronous>, transform_indices = @transform_2, window_bounds = array<i64: 1, 32>}, {pipeline_mode = #tpu.pipeline_mode<synchronous>, transform_indices = @transform_3, window_bounds = array<i64: 9, 32>}, {pipeline_mode = #tpu.pipeline_mode<synchronous>, transform_indices = @transform_4, window_bounds = array<i64: 1, 32>}, {pipeline_mode = #tpu.pipeline_mode<synchronous>, transform_indices = @transform_5, window_bounds = array<i64: 32, 128>}, {pipeline_mode = #tpu.pipeline_mode<synchronous>, transform_indices = @transform_6, window_bounds = array<i64: 1, 128>}, {pipeline_mode = #tpu.pipeline_mode<synchronous>, transform_indices = @transform_7, window_bounds = array<i64: 8, 128>}, {transform_indices = @transform_8, window_bounds = array<i64: 1, 256, 128>}]} {
    %cst = arith.constant 0.000000e+00 : f32
    %0 = vector.broadcast %cst : f32 to vector<1x32x32xf32>
    %c0 = arith.constant 0 : index
    %c0_0 = arith.constant 0 : index
    %c0_1 = arith.constant 0 : index
    %1 = vector.load %arg10[%c0, %c0_0, %c0_1] : memref<18x32x32xf32, #tpu.memory_space<vmem>>, vector<1x32x32xf32>
    tpu.vector_store %arg10[%c0, %c0_0, %c0_1], %0 {strides = array<i32>} : memref<18x32x32xf32, #tpu.memory_space<vmem>>, vector<1x32x32xf32>,
    %cst_2 = arith.constant 0.000000e+00 : f32
    %2 = vector.broadcast %cst_2 : f32 to vector<1x32x32xf32>
    %c17 = arith.constant 17 : index
    %c0_3 = arith.constant 0 : index
    %c0_4 = arith.constant 0 : index
    %3 = vector.load %arg10[%c17, %c0_3, %c0_4] : memref<18x32x32xf32, #tpu.memory_space<vmem>>, vector<1x32x32xf32>
    tpu.vector_store %arg10[%c17, %c0_3, %c0_4], %2 {strides = array<i32>} : memref<18x32x32xf32, #tpu.memory_space<vmem>>, vector<1x32x32xf32>,
    %cst_5 = arith.constant 0.000000e+00 : f32
    %4 = vector.broadcast %cst_5 : f32 to vector<16x8x32xf32>
    %c1 = arith.constant 1 : index
    %c0_6 = arith.constant 0 : index
    %c0_7 = arith.constant 0 : index
    %5 = vector.load %arg10[%c1, %c0_6, %c0_7] : memref<18x32x32xf32, #tpu.memory_space<vmem>>, vector<16x8x32xf32>
    tpu.vector_store %arg10[%c1, %c0_6, %c0_7], %4 {strides = array<i32>} : memref<18x32x32xf32, #tpu.memory_space<vmem>>, vector<16x8x32xf32>,
    %cst_8 = arith.constant 0.000000e+00 : f32
    %6 = vector.broadcast %cst_8 : f32 to vector<16x8x32xf32>
    %c1_9 = arith.constant 1 : index
    %c24 = arith.constant 24 : index
    %c0_10 = arith.constant 0 : index
    %7 = vector.load %arg10[%c1_9, %c24, %c0_10] : memref<18x32x32xf32, #tpu.memory_space<vmem>>, vector<16x8x32xf32>
    tpu.vector_store %arg10[%c1_9, %c24, %c0_10], %6 {strides = array<i32>} : memref<18x32x32xf32, #tpu.memory_space<vmem>>, vector<16x8x32xf32>,
    %c0_11 = arith.constant 0 : index
    %c0_12 = arith.constant 0 : index
    %c0_13 = arith.constant 0 : index
    %c0_14 = arith.constant 0 : index
    %8 = vector.load %arg1[%c0_11, %c0_12, %c0_13, %c0_14] : memref<1x16x16x8xf32, #tpu.memory_space<vmem>>, vector<1x16x16x8xf32>
    %9 = vector.shape_cast %8 : vector<1x16x16x8xf32> to vector<16x16x8xf32>
    %10 = vector.shape_cast %9 : vector<16x16x8xf32> to vector<256x8xf32>
    %c0_15 = arith.constant 0 : index
    %c0_16 = arith.constant 0 : index
    %11 = vector.load %arg2[%c0_15, %c0_16] : memref<8x32xf32, #tpu.memory_space<vmem>>, vector<8x32xf32>
    %cst_17 = arith.constant dense<0.000000e+00> : vector<256x32xf32>
    %12 = tpu.matmul %10, %11, %cst_17 {dimension_numbers = #tpu.dot_dimension_numbers<[1], [0], [0], [1], [0, 0, 1, 1], [], []>} : vector<256x8xf32>, vector<8x32xf32>, vector<256x32xf32> -> vector<256x32xf32>
    %c0_18 = arith.constant 0 : index
    %c0_19 = arith.constant 0 : index
    %13 = vector.load %arg3[%c0_18, %c0_19] : memref<1x32xf32, #tpu.memory_space<vmem>>, vector<1x32xf32>
    %14 = vector.broadcast %13 : vector<1x32xf32> to vector<256x32xf32>
    %15 = arith.addf %12, %14 : vector<256x32xf32>
    %cst_20 = arith.constant 0.000000e+00 : f32
    %cst_21 = arith.constant 6.000000e+00 : f32
    %16 = vector.broadcast %cst_20 : f32 to vector<256x32xf32>
    %17 = arith.maximumf %16, %15 : vector<256x32xf32>
    %18 = vector.broadcast %cst_21 : f32 to vector<256x32xf32>
    %19 = arith.minimumf %18, %17 : vector<256x32xf32>
    %20 = vector.shape_cast %19 : vector<256x32xf32> to vector<16x16x32xf32>
    %c1_22 = arith.constant 1 : index
    %c8 = arith.constant 8 : index
    %c0_23 = arith.constant 0 : index
    %21 = vector.load %arg10[%c1_22, %c8, %c0_23] : memref<18x32x32xf32, #tpu.memory_space<vmem>>, vector<16x16x32xf32>
    tpu.vector_store %arg10[%c1_22, %c8, %c0_23], %20 {strides = array<i32>} : memref<18x32x32xf32, #tpu.memory_space<vmem>>, vector<16x16x32xf32>,
    %c0_24 = arith.constant 0 : index
    %c0_25 = arith.constant 0 : index
    %22 = vector.load %arg4[%c0_24, %c0_25] : memref<9x32xf32, #tpu.memory_space<vmem>>, vector<9x32xf32>
    %cst_26 = arith.constant 0.000000e+00 : f32
    %23 = vector.broadcast %cst_26 : f32 to vector<16x16x32xf32>
    %c0_27 = arith.constant 0 : index
    %c7 = arith.constant 7 : index
    %c0_28 = arith.constant 0 : index
    %24 = vector.load %arg10[%c0_27, %c7, %c0_28] : memref<18x32x32xf32, #tpu.memory_space<vmem>>, vector<16x16x32xf32>
    %25 = vector.extract_strided_slice %22 {offsets = [0, 0], sizes = [1, 32], strides = [1, 1]} : vector<9x32xf32> to vector<1x32xf32>
    %26 = vector.shape_cast %25 : vector<1x32xf32> to vector<32xf32>
    %27 = vector.shape_cast %26 : vector<32xf32> to vector<1x1x32xf32>
    %28 = vector.broadcast %27 : vector<1x1x32xf32> to vector<16x16x32xf32>
    %29 = arith.mulf %24, %28 : vector<16x16x32xf32>
    %30 = arith.addf %23, %29 : vector<16x16x32xf32>
    %c0_29 = arith.constant 0 : index
    %c8_30 = arith.constant 8 : index
    %c0_31 = arith.constant 0 : index
    %31 = vector.load %arg10[%c0_29, %c8_30, %c0_31] : memref<18x32x32xf32, #tpu.memory_space<vmem>>, vector<16x16x32xf32>
    %32 = vector.extract_strided_slice %22 {offsets = [1, 0], sizes = [1, 32], strides = [1, 1]} : vector<9x32xf32> to vector<1x32xf32>
    %33 = vector.shape_cast %32 : vector<1x32xf32> to vector<32xf32>
    %34 = vector.shape_cast %33 : vector<32xf32> to vector<1x1x32xf32>
    %35 = vector.broadcast %34 : vector<1x1x32xf32> to vector<16x16x32xf32>
    %36 = arith.mulf %31, %35 : vector<16x16x32xf32>
    %37 = arith.addf %30, %36 : vector<16x16x32xf32>
    %c0_32 = arith.constant 0 : index
    %c9 = arith.constant 9 : index
    %c0_33 = arith.constant 0 : index
    %38 = vector.load %arg10[%c0_32, %c9, %c0_33] : memref<18x32x32xf32, #tpu.memory_space<vmem>>, vector<16x16x32xf32>
    %39 = vector.extract_strided_slice %22 {offsets = [2, 0], sizes = [1, 32], strides = [1, 1]} : vector<9x32xf32> to vector<1x32xf32>
    %40 = vector.shape_cast %39 : vector<1x32xf32> to vector<32xf32>
    %41 = vector.shape_cast %40 : vector<32xf32> to vector<1x1x32xf32>
    %42 = vector.broadcast %41 : vector<1x1x32xf32> to vector<16x16x32xf32>
    %43 = arith.mulf %38, %42 : vector<16x16x32xf32>
    %44 = arith.addf %37, %43 : vector<16x16x32xf32>
    %c1_34 = arith.constant 1 : index
    %c7_35 = arith.constant 7 : index
    %c0_36 = arith.constant 0 : index
    %45 = vector.load %arg10[%c1_34, %c7_35, %c0_36] : memref<18x32x32xf32, #tpu.memory_space<vmem>>, vector<16x16x32xf32>
    %46 = vector.extract_strided_slice %22 {offsets = [3, 0], sizes = [1, 32], strides = [1, 1]} : vector<9x32xf32> to vector<1x32xf32>
    %47 = vector.shape_cast %46 : vector<1x32xf32> to vector<32xf32>
    %48 = vector.shape_cast %47 : vector<32xf32> to vector<1x1x32xf32>
    %49 = vector.broadcast %48 : vector<1x1x32xf32> to vector<16x16x32xf32>
    %50 = arith.mulf %45, %49 : vector<16x16x32xf32>
    %51 = arith.addf %44, %50 : vector<16x16x32xf32>
    %c1_37 = arith.constant 1 : index
    %c8_38 = arith.constant 8 : index
    %c0_39 = arith.constant 0 : index
    %52 = vector.load %arg10[%c1_37, %c8_38, %c0_39] : memref<18x32x32xf32, #tpu.memory_space<vmem>>, vector<16x16x32xf32>
    %53 = vector.extract_strided_slice %22 {offsets = [4, 0], sizes = [1, 32], strides = [1, 1]} : vector<9x32xf32> to vector<1x32xf32>
    %54 = vector.shape_cast %53 : vector<1x32xf32> to vector<32xf32>
    %55 = vector.shape_cast %54 : vector<32xf32> to vector<1x1x32xf32>
    %56 = vector.broadcast %55 : vector<1x1x32xf32> to vector<16x16x32xf32>
    %57 = arith.mulf %52, %56 : vector<16x16x32xf32>
    %58 = arith.addf %51, %57 : vector<16x16x32xf32>
    %c1_40 = arith.constant 1 : index
    %c9_41 = arith.constant 9 : index
    %c0_42 = arith.constant 0 : index
    %59 = vector.load %arg10[%c1_40, %c9_41, %c0_42] : memref<18x32x32xf32, #tpu.memory_space<vmem>>, vector<16x16x32xf32>
    %60 = vector.extract_strided_slice %22 {offsets = [5, 0], sizes = [1, 32], strides = [1, 1]} : vector<9x32xf32> to vector<1x32xf32>
    %61 = vector.shape_cast %60 : vector<1x32xf32> to vector<32xf32>
    %62 = vector.shape_cast %61 : vector<32xf32> to vector<1x1x32xf32>
    %63 = vector.broadcast %62 : vector<1x1x32xf32> to vector<16x16x32xf32>
    %64 = arith.mulf %59, %63 : vector<16x16x32xf32>
    %65 = arith.addf %58, %64 : vector<16x16x32xf32>
    %c2 = arith.constant 2 : index
    %c7_43 = arith.constant 7 : index
    %c0_44 = arith.constant 0 : index
    %66 = vector.load %arg10[%c2, %c7_43, %c0_44] : memref<18x32x32xf32, #tpu.memory_space<vmem>>, vector<16x16x32xf32>
    %67 = vector.extract_strided_slice %22 {offsets = [6, 0], sizes = [1, 32], strides = [1, 1]} : vector<9x32xf32> to vector<1x32xf32>
    %68 = vector.shape_cast %67 : vector<1x32xf32> to vector<32xf32>
    %69 = vector.shape_cast %68 : vector<32xf32> to vector<1x1x32xf32>
    %70 = vector.broadcast %69 : vector<1x1x32xf32> to vector<16x16x32xf32>
    %71 = arith.mulf %66, %70 : vector<16x16x32xf32>
    %72 = arith.addf %65, %71 : vector<16x16x32xf32>
    %c2_45 = arith.constant 2 : index
    %c8_46 = arith.constant 8 : index
    %c0_47 = arith.constant 0 : index
    %73 = vector.load %arg10[%c2_45, %c8_46, %c0_47] : memref<18x32x32xf32, #tpu.memory_space<vmem>>, vector<16x16x32xf32>
    %74 = vector.extract_strided_slice %22 {offsets = [7, 0], sizes = [1, 32], strides = [1, 1]} : vector<9x32xf32> to vector<1x32xf32>
    %75 = vector.shape_cast %74 : vector<1x32xf32> to vector<32xf32>
    %76 = vector.shape_cast %75 : vector<32xf32> to vector<1x1x32xf32>
    %77 = vector.broadcast %76 : vector<1x1x32xf32> to vector<16x16x32xf32>
    %78 = arith.mulf %73, %77 : vector<16x16x32xf32>
    %79 = arith.addf %72, %78 : vector<16x16x32xf32>
    %c2_48 = arith.constant 2 : index
    %c9_49 = arith.constant 9 : index
    %c0_50 = arith.constant 0 : index
    %80 = vector.load %arg10[%c2_48, %c9_49, %c0_50] : memref<18x32x32xf32, #tpu.memory_space<vmem>>, vector<16x16x32xf32>
    %81 = vector.extract_strided_slice %22 {offsets = [8, 0], sizes = [1, 32], strides = [1, 1]} : vector<9x32xf32> to vector<1x32xf32>
    %82 = vector.shape_cast %81 : vector<1x32xf32> to vector<32xf32>
    %83 = vector.shape_cast %82 : vector<32xf32> to vector<1x1x32xf32>
    %84 = vector.broadcast %83 : vector<1x1x32xf32> to vector<16x16x32xf32>
    %85 = arith.mulf %80, %84 : vector<16x16x32xf32>
    %86 = arith.addf %79, %85 : vector<16x16x32xf32>
    %c0_51 = arith.constant 0 : index
    %c0_52 = arith.constant 0 : index
    %87 = vector.load %arg5[%c0_51, %c0_52] : memref<1x32xf32, #tpu.memory_space<vmem>>, vector<1x32xf32>
    %88 = vector.shape_cast %87 : vector<1x32xf32> to vector<1x1x32xf32>
    %89 = vector.broadcast %88 : vector<1x1x32xf32> to vector<16x16x32xf32>
    %90 = arith.addf %86, %89 : vector<16x16x32xf32>
    %cst_53 = arith.constant 0.000000e+00 : f32
    %cst_54 = arith.constant 6.000000e+00 : f32
    %91 = vector.broadcast %cst_53 : f32 to vector<16x16x32xf32>
    %92 = arith.maximumf %91, %90 : vector<16x16x32xf32>
    %93 = vector.broadcast %cst_54 : f32 to vector<16x16x32xf32>
    %94 = arith.minimumf %93, %92 : vector<16x16x32xf32>
    %95 = vector.shape_cast %94 : vector<16x16x32xf32> to vector<256x32xf32>
    %c0_55 = arith.constant 0 : index
    %c0_56 = arith.constant 0 : index
    %96 = vector.load %arg6[%c0_55, %c0_56] : memref<32x128xf32, #tpu.memory_space<vmem>>, vector<32x128xf32>
    %cst_57 = arith.constant dense<0.000000e+00> : vector<256x128xf32>
    %97 = tpu.matmul %95, %96, %cst_57 {dimension_numbers = #tpu.dot_dimension_numbers<[1], [0], [0], [1], [0, 0, 1, 1], [], []>} : vector<256x32xf32>, vector<32x128xf32>, vector<256x128xf32> -> vector<256x128xf32>
    %c0_58 = arith.constant 0 : index
    %c0_59 = arith.constant 0 : index
    %98 = vector.load %arg7[%c0_58, %c0_59] : memref<1x128xf32, #tpu.memory_space<vmem>>, vector<1x128xf32>
    %99 = vector.broadcast %98 : vector<1x128xf32> to vector<256x128xf32>
    %100 = arith.addf %97, %99 : vector<256x128xf32>
    %c0_60 = arith.constant 0 : index
    %c0_61 = arith.constant 0 : index
    %101 = vector.load %arg8[%c0_60, %c0_61] : memref<8x128xf32, #tpu.memory_space<vmem>>, vector<8x128xf32>
    %cst_62 = arith.constant dense<0.000000e+00> : vector<256x128xf32>
    %102 = tpu.matmul %10, %101, %cst_62 {dimension_numbers = #tpu.dot_dimension_numbers<[1], [0], [0], [1], [0, 0, 1, 1], [], []>} : vector<256x8xf32>, vector<8x128xf32>, vector<256x128xf32> -> vector<256x128xf32>
    %103 = arith.addf %100, %102 : vector<256x128xf32>
    %c0_63 = arith.constant 0 : index
    %c0_64 = arith.constant 0 : index
    %c0_65 = arith.constant 0 : index
    %104 = vector.load %arg9[%c0_63, %c0_64, %c0_65] : memref<1x256x128xf32, #tpu.memory_space<vmem>>, vector<1x256x128xf32>
    %105 = vector.shape_cast %104 : vector<1x256x128xf32> to vector<256x128xf32>
    %106 = vector.shape_cast %103 : vector<256x128xf32> to vector<1x256x128xf32>
    tpu.vector_store %arg9[%c0_63, %c0_64, %c0_65], %106 {strides = array<i32>} : memref<1x256x128xf32, #tpu.memory_space<vmem>>, vector<1x256x128xf32>,
    return
  }
  func.func @transform_0(%arg0: i32) -> (i32, i32, i32, i32) {
    %c0_i32 = arith.constant 0 : i32
    %c0_i32_0 = arith.constant 0 : i32
    %c0_i32_1 = arith.constant 0 : i32
    %c0_i32_2 = arith.constant 0 : i32
    return %arg0, %c0_i32, %c0_i32_0, %c0_i32_1 : i32, i32, i32, i32
  }
  func.func @transform_1(%arg0: i32) -> (i32, i32) {
    %c0_i32 = arith.constant 0 : i32
    %c0_i32_0 = arith.constant 0 : i32
    %c0_i32_1 = arith.constant 0 : i32
    return %c0_i32, %c0_i32_0 : i32, i32
  }
  func.func @transform_2(%arg0: i32) -> (i32, i32) {
    %c0_i32 = arith.constant 0 : i32
    %c0_i32_0 = arith.constant 0 : i32
    %c0_i32_1 = arith.constant 0 : i32
    return %c0_i32, %c0_i32_0 : i32, i32
  }
  func.func @transform_3(%arg0: i32) -> (i32, i32) {
    %c0_i32 = arith.constant 0 : i32
    %c0_i32_0 = arith.constant 0 : i32
    %c0_i32_1 = arith.constant 0 : i32
    return %c0_i32, %c0_i32_0 : i32, i32
  }
  func.func @transform_4(%arg0: i32) -> (i32, i32) {
    %c0_i32 = arith.constant 0 : i32
    %c0_i32_0 = arith.constant 0 : i32
    %c0_i32_1 = arith.constant 0 : i32
    return %c0_i32, %c0_i32_0 : i32, i32
  }
  func.func @transform_5(%arg0: i32) -> (i32, i32) {
    %c0_i32 = arith.constant 0 : i32
    %c0_i32_0 = arith.constant 0 : i32
    %c0_i32_1 = arith.constant 0 : i32
    return %c0_i32, %c0_i32_0 : i32, i32
  }
  func.func @transform_6(%arg0: i32) -> (i32, i32) {
    %c0_i32 = arith.constant 0 : i32
    %c0_i32_0 = arith.constant 0 : i32
    %c0_i32_1 = arith.constant 0 : i32
    return %c0_i32, %c0_i32_0 : i32, i32
  }
  func.func @transform_7(%arg0: i32) -> (i32, i32) {
    %c0_i32 = arith.constant 0 : i32
    %c0_i32_0 = arith.constant 0 : i32
    %c0_i32_1 = arith.constant 0 : i32
    return %c0_i32, %c0_i32_0 : i32, i32
  }
  func.func @transform_8(%arg0: i32) -> (i32, i32, i32) {
    %c0_i32 = arith.constant 0 : i32
    %c0_i32_0 = arith.constant 0 : i32
    %c0_i32_1 = arith.constant 0 : i32
    return %arg0, %c0_i32, %c0_i32_0 : i32, i32, i32
  }
}

</mosaic_0001>

<llo_original>
// kernel: a_call__.1
$region0: #{a_call__.1}
  #allocation0 [shape = 'u32[]', space=smem, size = 0x4, offset = 0x4, fixed_abs, tag = 'smem constant byte address 0x4 - core index']
  #allocation1 [shape = 'u32[144,128]{1,0:T(1,128)}', space=vmem, size = 0x12000, scoped, tag = 'internal scratch']
  #allocation2 [shape = 'f32[18,32,32]{2,1,0:T(8,128)}', space=vmem, size = 0x48000, scoped, tag = 'scratch operand']
  %s0 = inlined_call_operand.vmem [shape: f32[2,16,16,8], index: 0, kind: input, shape index: {}]
  %s1 = inlined_call_operand.vmem [shape: f32[8,32], index: 1, kind: input, shape index: {}]
  %s2 = inlined_call_operand.vmem [shape: f32[1,32], index: 2, kind: input, shape index: {}]
  %s3 = inlined_call_operand.vmem [shape: f32[9,32], index: 3, kind: input, shape index: {}]
  %s4 = inlined_call_operand.vmem [shape: f32[1,32], index: 4, kind: input, shape index: {}]
  %s5 = inlined_call_operand.vmem [shape: f32[32,128], index: 5, kind: input, shape index: {}]
  %s6 = inlined_call_operand.vmem [shape: f32[1,128], index: 6, kind: input, shape index: {}]
  %s7 = inlined_call_operand.vmem [shape: f32[8,128], index: 7, kind: input, shape index: {}]
  %s8 = inlined_call_operand.vmem [shape: f32[2,256,128], index: 8, kind: output, shape index: {}]
  %s9 = sld [smem:[#allocation0]]
  $region65: #{a_call__.1} parent=0
    _
  %s11 = ssub.s32 1, %s9
  %s12 = scalar_select 0, %s11, %s9
  loop: start=0, step=1, limit=4
  $region2: #{a_call__.1} parent=0 // loop_pre_header
    _
  $region3: #{a_call__.1} parent=0 // loop_header
    %s14 = sphi 0, %s18
    %p15 = scmp.ge.s32.totalorder %s14, 4
    %s24 = sphi 0, %s26
    %s27 = sphi 0, %s24
    %s28 = sphi 0, %s27
    %s44 = sphi 0, %s28
    %s48 = sphi 0, %s48
    %s50 = sphi 0, %s48
    %s51 = sphi 0, %s50
    %s65 = sphi 0, %s51
    %s69 = sphi 0, %s69
    %s71 = sphi 0, %s69
    %s72 = sphi 0, %s71
    %s86 = sphi 0, %s72
    %s90 = sphi 0, %s90
    %s92 = sphi 0, %s90
    %s93 = sphi 0, %s92
    %s107 = sphi 0, %s93
    %s111 = sphi 0, %s111
    %s113 = sphi 0, %s111
    %s114 = sphi 0, %s113
    %s128 = sphi 0, %s114
    %s132 = sphi 0, %s132
    %s134 = sphi 0, %s132
    %s135 = sphi 0, %s134
    %s149 = sphi 0, %s135
    %s153 = sphi 0, %s153
    %s155 = sphi 0, %s153
    %s156 = sphi 0, %s155
    %s170 = sphi 0, %s156
    %s174 = sphi 0, %s174
    %s176 = sphi 0, %s174
    %s177 = sphi 0, %s176
    %s191 = sphi 0, %s177
    %s197 = sphi 0, %s199
    %s200 = sphi 0, %s197
    %s201 = sphi 0, %s200
    %s217 = sphi 0, %s201
  $region4: #{a_call__.1} parent=0 // loop_header_branch
    %17 = sbr.rel (%p15) target = $region8
  $region5: #{a_call__.1} parent=0 // loop_body
    %s19 = ssub.s32 %s14, 1
    %s20 = ssub.s32 %s14, 2
    %s21 = sadd.s32 %s14, 1
    %s22 = ssub.s32 %s14, %s21
    %p23 = scmp.eq.s32.totalorder %s22, 0
    %s25 = sadd.s32 %s24, 1
    %s26 = scalar_select %p23, %s24, %s25
    %p29 = pneg %p23
    %p30 = scmp.eq.s32.totalorder %s14, 1
    %p31 = por %p29, %p30
    %p32 = scmp.ne.s32.totalorder %s24, %s27
    %p33 = scmp.eq.s32.totalorder %s14, 0
    %p34 = por %p32, %p33
    %p35 = scmp.ne.s32.totalorder %s24, %s27
    %p36 = scmp.eq.s32.totalorder %s19, 1
    %p37 = por %p35, %p36
    %p38 = scmp.ne.s32.totalorder %s27, %s28
    %p39 = scmp.eq.s32.totalorder %s19, 0
    %p40 = por %p38, %p39
    %p41 = scmp.ne.s32.totalorder %s27, %s28
    %p42 = scmp.eq.s32.totalorder %s20, 1
    %p43 = por %p41, %p42
    %p45 = scmp.ne.s32.totalorder %s28, %s44
    %p46 = scmp.eq.s32.totalorder %s20, 0
    %p47 = por %p45, %p46
    %s49 = sadd.s32 %s48, 1
    %p52 = scmp.eq.s32.totalorder %s14, 1
    %p53 = scmp.ne.s32.totalorder %s48, %s50
    %p54 = scmp.eq.s32.totalorder %s14, 0
    %p55 = por %p53, %p54
    %p56 = scmp.ne.s32.totalorder %s48, %s50
    %p57 = scmp.eq.s32.totalorder %s19, 1
    %p58 = por %p56, %p57
    %p59 = scmp.ne.s32.totalorder %s50, %s51
    %p60 = scmp.eq.s32.totalorder %s19, 0
    %p61 = por %p59, %p60
    %p62 = scmp.ne.s32.totalorder %s50, %s51
    %p63 = scmp.eq.s32.totalorder %s20, 1
    %p64 = por %p62, %p63
    %p66 = scmp.ne.s32.totalorder %s51, %s65
    %p67 = scmp.eq.s32.totalorder %s20, 0
    %p68 = por %p66, %p67
    %s70 = sadd.s32 %s69, 1
    %p73 = scmp.eq.s32.totalorder %s14, 1
    %p74 = scmp.ne.s32.totalorder %s69, %s71
    %p75 = scmp.eq.s32.totalorder %s14, 0
    %p76 = por %p74, %p75
    %p77 = scmp.ne.s32.totalorder %s69, %s71
    %p78 = scmp.eq.s32.totalorder %s19, 1
    %p79 = por %p77, %p78
    %p80 = scmp.ne.s32.totalorder %s71, %s72
    %p81 = scmp.eq.s32.totalorder %s19, 0
    %p82 = por %p80, %p81
    %p83 = scmp.ne.s32.totalorder %s71, %s72
    %p84 = scmp.eq.s32.totalorder %s20, 1
    %p85 = por %p83, %p84
    %p87 = scmp.ne.s32.totalorder %s72, %s86
    %p88 = scmp.eq.s32.totalorder %s20, 0
    %p89 = por %p87, %p88
    %s91 = sadd.s32 %s90, 1
    %p94 = scmp.eq.s32.totalorder %s14, 1
    %p95 = scmp.ne.s32.totalorder %s90, %s92
    %p96 = scmp.eq.s32.totalorder %s14, 0
    %p97 = por %p95, %p96
    %p98 = scmp.ne.s32.totalorder %s90, %s92
    %p99 = scmp.eq.s32.totalorder %s19, 1
    %p100 = por %p98, %p99
    %p101 = scmp.ne.s32.totalorder %s92, %s93
    %p102 = scmp.eq.s32.totalorder %s19, 0
    %p103 = por %p101, %p102
    %p104 = scmp.ne.s32.totalorder %s92, %s93
    %p105 = scmp.eq.s32.totalorder %s20, 1
    %p106 = por %p104, %p105
    %p108 = scmp.ne.s32.totalorder %s93, %s107
    %p109 = scmp.eq.s32.totalorder %s20, 0
    %p110 = por %p108, %p109
    %s112 = sadd.s32 %s111, 1
    %p115 = scmp.eq.s32.totalorder %s14, 1
    %p116 = scmp.ne.s32.totalorder %s111, %s113
    %p117 = scmp.eq.s32.totalorder %s14, 0
    %p118 = por %p116, %p117
    %p119 = scmp.ne.s32.totalorder %s111, %s113
    %p120 = scmp.eq.s32.totalorder %s19, 1
    %p121 = por %p119, %p120
    %p122 = scmp.ne.s32.totalorder %s113, %s114
    %p123 = scmp.eq.s32.totalorder %s19, 0
    %p124 = por %p122, %p123
    %p125 = scmp.ne.s32.totalorder %s113, %s114
    %p126 = scmp.eq.s32.totalorder %s20, 1
    %p127 = por %p125, %p126
    %p129 = scmp.ne.s32.totalorder %s114, %s128
    %p130 = scmp.eq.s32.totalorder %s20, 0
    %p131 = por %p129, %p130
    %s133 = sadd.s32 %s132, 1
    %p136 = scmp.eq.s32.totalorder %s14, 1
    %p137 = scmp.ne.s32.totalorder %s132, %s134
    %p138 = scmp.eq.s32.totalorder %s14, 0
    %p139 = por %p137, %p138
    %p140 = scmp.ne.s32.totalorder %s132, %s134
    %p141 = scmp.eq.s32.totalorder %s19, 1
    %p142 = por %p140, %p141
    %p143 = scmp.ne.s32.totalorder %s134, %s135
    %p144 = scmp.eq.s32.totalorder %s19, 0
    %p145 = por %p143, %p144
    %p146 = scmp.ne.s32.totalorder %s134, %s135
    %p147 = scmp.eq.s32.totalorder %s20, 1
    %p148 = por %p146, %p147
    %p150 = scmp.ne.s32.totalorder %s135, %s149
    %p151 = scmp.eq.s32.totalorder %s20, 0
    %p152 = por %p150, %p151
    %s154 = sadd.s32 %s153, 1
    %p157 = scmp.eq.s32.totalorder %s14, 1
    %p158 = scmp.ne.s32.totalorder %s153, %s155
    %p159 = scmp.eq.s32.totalorder %s14, 0
    %p160 = por %p158, %p159
    %p161 = scmp.ne.s32.totalorder %s153, %s155
    %p162 = scmp.eq.s32.totalorder %s19, 1
    %p163 = por %p161, %p162
    %p164 = scmp.ne.s32.totalorder %s155, %s156
    %p165 = scmp.eq.s32.totalorder %s19, 0
    %p166 = por %p164, %p165
    %p167 = scmp.ne.s32.totalorder %s155, %s156
    %p168 = scmp.eq.s32.totalorder %s20, 1
    %p169 = por %p167, %p168
    %p171 = scmp.ne.s32.totalorder %s156, %s170
    %p172 = scmp.eq.s32.totalorder %s20, 0
    %p173 = por %p171, %p172
    %s175 = sadd.s32 %s174, 1
    %p178 = scmp.eq.s32.totalorder %s14, 1
    %p179 = scmp.ne.s32.totalorder %s174, %s176
    %p180 = scmp.eq.s32.totalorder %s14, 0
    %p181 = por %p179, %p180
    %p182 = scmp.ne.s32.totalorder %s174, %s176
    %p183 = scmp.eq.s32.totalorder %s19, 1
    %p184 = por %p182, %p183
    %p185 = scmp.ne.s32.totalorder %s176, %s177
    %p186 = scmp.eq.s32.totalorder %s19, 0
    %p187 = por %p185, %p186
    %p188 = scmp.ne.s32.totalorder %s176, %s177
    %p189 = scmp.eq.s32.totalorder %s20, 1
    %p190 = por %p188, %p189
    %p192 = scmp.ne.s32.totalorder %s177, %s191
    %p193 = scmp.eq.s32.totalorder %s20, 0
    %p194 = por %p192, %p193
    %s195 = ssub.s32 %s14, %s21
    %p196 = scmp.eq.s32.totalorder %s195, 0
    %s198 = sadd.s32 %s197, 1
    %s199 = scalar_select %p196, %s197, %s198
    %p202 = pneg %p196
    %p203 = scmp.eq.s32.totalorder %s14, 1
    %p204 = por %p202, %p203
    %p205 = scmp.ne.s32.totalorder %s197, %s200
    %p206 = scmp.eq.s32.totalorder %s14, 0
    %p207 = por %p205, %p206
    %p208 = scmp.ne.s32.totalorder %s197, %s200
    %p209 = scmp.eq.s32.totalorder %s19, 1
    %p210 = por %p208, %p209
    %p211 = scmp.ne.s32.totalorder %s200, %s201
    %p212 = scmp.eq.s32.totalorder %s19, 0
    %p213 = por %p211, %p212
    %p214 = scmp.ne.s32.totalorder %s200, %s201
    %p215 = scmp.eq.s32.totalorder %s20, 1
    %p216 = por %p214, %p215
    %p218 = scmp.ne.s32.totalorder %s201, %s217
    %p219 = scmp.eq.s32.totalorder %s20, 0
    %p220 = por %p218, %p219
    %p221 = scmp.le.s32.totalorder 1, %s14
    %p222 = scmp.lt.s32.totalorder %s14, 3
    %p223 = pnand %p221, %p222
    %p224 = pneg %p223
    // Predicated region
    $region9: #{a_call__.1} parent=5 // pred_check
      _
    $region10: #{a_call__.1} parent=5 // pred_check_branch
      %226 = sbr.rel (%p223) target = $region12
    $region11: #{a_call__.1} parent=5 // pred_region
      %s227 = ssub.s32 %s14, 1
      // Predicated region
      $region13: #{a_call__.1} parent=11 // pred_check
        %p228 = pneg %p61
      $region14: #{a_call__.1} parent=11 // pred_check_branch
        %230 = sbr.rel (%p228) target = $region16
      $region15: #{a_call__.1} parent=11 // pred_region
        _
      $region16: #{a_call__.1} parent=11 // pred_fallthru
        _
      // Predicated region
      $region17: #{a_call__.1} parent=11 // pred_check
        %p231 = pneg %p82
      $region18: #{a_call__.1} parent=11 // pred_check_branch
        %233 = sbr.rel (%p231) target = $region20
      $region19: #{a_call__.1} parent=11 // pred_region
        _
      $region20: #{a_call__.1} parent=11 // pred_fallthru
        _
      // Predicated region
      $region21: #{a_call__.1} parent=11 // pred_check
        %p234 = pneg %p103
      $region22: #{a_call__.1} parent=11 // pred_check_branch
        %236 = sbr.rel (%p234) target = $region24
      $region23: #{a_call__.1} parent=11 // pred_region
        _
      $region24: #{a_call__.1} parent=11 // pred_fallthru
        _
      // Predicated region
      $region25: #{a_call__.1} parent=11 // pred_check
        %p237 = pneg %p124
      $region26: #{a_call__.1} parent=11 // pred_check_branch
        %239 = sbr.rel (%p237) target = $region28
      $region27: #{a_call__.1} parent=11 // pred_region
        _
      $region28: #{a_call__.1} parent=11 // pred_fallthru
        _
      // Predicated region
      $region29: #{a_call__.1} parent=11 // pred_check
        %p240 = pneg %p145
      $region30: #{a_call__.1} parent=11 // pred_check_branch
        %242 = sbr.rel (%p240) target = $region32
      $region31: #{a_call__.1} parent=11 // pred_region
        _
      $region32: #{a_call__.1} parent=11 // pred_fallthru
        _
      // Predicated region
      $region33: #{a_call__.1} parent=11 // pred_check
        %p243 = pneg %p166
      $region34: #{a_call__.1} parent=11 // pred_check_branch
        %245 = sbr.rel (%p243) target = $region36
      $region35: #{a_call__.1} parent=11 // pred_region
        _
      $region36: #{a_call__.1} parent=11 // pred_fallthru
        _
      // Predicated region
      $region37: #{a_call__.1} parent=11 // pred_check
        %p246 = pneg %p187
      $region38: #{a_call__.1} parent=11 // pred_check_branch
        %248 = sbr.rel (%p246) target = $region40
      $region39: #{a_call__.1} parent=11 // pred_region
        _
      $region40: #{a_call__.1} parent=11 // pred_fallthru
        _
    $region12: #{a_call__.1} parent=5 // pred_fallthru
      _
    %p249 = scmp.lt.s32.totalorder %s14, 2
    // Predicated region
    $region41: #{a_call__.1} parent=5 // pred_check
      %p250 = pneg %p249
    $region42: #{a_call__.1} parent=5 // pred_check_branch
      %252 = sbr.rel (%p250) target = $region44
    $region43: #{a_call__.1} parent=5 // pred_region
      // Predicated region
      $region45: #{a_call__.1} parent=43 // pred_check
        %p253 = pneg %p34
      $region46: #{a_call__.1} parent=43 // pred_check_branch
        %255 = sbr.rel (%p253) target = $region48
      $region47: #{a_call__.1} parent=43 // pred_region
        %p256 = scmp.lt.s32.totalorder %s14, 1
        %s257 = scalar_select %p256, %s14, 1
        %s258 = smul.addr %s257, 32
        %s259 = smul.addr %s258, 8
        %s260 = scalar_lea.vmem %s0, %s259
      $region48: #{a_call__.1} parent=43 // pred_fallthru
        _
    $region44: #{a_call__.1} parent=5 // pred_fallthru
      _
    %p261 = scmp.le.s32.totalorder 1, %s14
    %p262 = scmp.lt.s32.totalorder %s14, 3
    %p263 = pnand %p261, %p262
    %p264 = pneg %p263
    // Predicated region
    $region49: #{a_call__.1} parent=5 // pred_check
      _
    $region50: #{a_call__.1} parent=5 // pred_check_branch
      %266 = sbr.rel (%p263) target = $region52
    $region51: #{a_call__.1} parent=5 // pred_region
      %s267 = ssub.s32 %s14, 1
      %p268 = scmp.lt.s32.totalorder %s19, 1
      %s269 = scalar_select %p268, %s19, 1
      %s270 = smul.addr %s269, 32
      %s271 = smul.addr %s270, 8
      %s272 = scalar_lea.vmem %s0, %s271
      %p273 = pneg %p40
      %p274 = pneg %p37
      %p275 = pneg %p61
      %p276 = pneg %p58
      %p277 = pneg %p82
      %p278 = pneg %p79
      %p279 = pneg %p103
      %p280 = pneg %p100
      %p281 = pneg %p124
      %p282 = pneg %p121
      %p283 = pneg %p145
      %p284 = pneg %p142
      %p285 = pneg %p166
      %p286 = pneg %p163
      %p287 = pneg %p187
      %p288 = pneg %p184
      %p289 = pneg %p213
      %p290 = pneg %p210
      %p291 = scmp.lt.s32.totalorder %s19, 1
      %s292 = scalar_select %p291, %s19, 1
      %s293 = smul.addr %s292, 32
      %s294 = smul.addr %s293, 8
      %s295 = scalar_lea.vmem %s8, %s294
      %p296 = scmp.lt.s32.totalorder %s19, 1
      %s297 = scalar_select %p296, %s19, 1
      %s298 = smul.addr %s297, 32
      %s299 = smul.addr %s298, 8
      %s300 = scalar_lea.vmem %s0, %s299
      %p301 = scmp.lt.s32.totalorder %s19, 1
      %s302 = scalar_select %p301, %s19, 1
      %s303 = smul.addr %s302, 32
      %s304 = smul.addr %s303, 8
      %s305 = scalar_lea.vmem %s8, %s304
      %vm306 = vcmask 261120
      %307 = vst.msk [vmem:[#allocation2] sm:$0xff] %vm306, 0.0
      %308 = vst.msk [vmem:[#allocation2 + $0x8] sm:$0xff] %vm306, 0.0
      %309 = vst.msk [vmem:[#allocation2 + $0x10] sm:$0xff] %vm306, 0.0
      %310 = vst.msk [vmem:[#allocation2 + $0x18] sm:$0xff] %vm306, 0.0
      %s311 = scalar_lea.vmem [#allocation2], 544
      %312 = vst.msk [vmem:[%s311] sm:$0xff] %vm306, 0.0
      %313 = vst.msk [vmem:[%s311 + $0x8] sm:$0xff] %vm306, 0.0
      %314 = vst.msk [vmem:[%s311 + $0x10] sm:$0xff] %vm306, 0.0
      %315 = vst.msk [vmem:[%s311 + $0x18] sm:$0xff] %vm306, 0.0
      %s316 = scalar_lea.vmem [#allocation2], 32
      %317 = vst.msk [vmem:[%s316] sm:$0xff] %vm306, 0.0
      %318 = vst.msk [vmem:[%s316 + $0x20] sm:$0xff] %vm306, 0.0
      %319 = vst.msk [vmem:[%s316 + $0x40] sm:$0xff] %vm306, 0.0
      %320 = vst.msk [vmem:[%s316 + $0x60] sm:$0xff] %vm306, 0.0
      %321 = vst.msk [vmem:[%s316 + $0x80] sm:$0xff] %vm306, 0.0
      %322 = vst.msk [vmem:[%s316 + $0xa0] sm:$0xff] %vm306, 0.0
      %323 = vst.msk [vmem:[%s316 + $0xc0] sm:$0xff] %vm306, 0.0
      %324 = vst.msk [vmem:[%s316 + $0xe0] sm:$0xff] %vm306, 0.0
      %325 = vst.msk [vmem:[%s316 + $0x100] sm:$0xff] %vm306, 0.0
      %326 = vst.msk [vmem:[%s316 + $0x120] sm:$0xff] %vm306, 0.0
      %327 = vst.msk [vmem:[%s316 + $0x140] sm:$0xff] %vm306, 0.0
      %328 = vst.msk [vmem:[%s316 + $0x160] sm:$0xff] %vm306, 0.0
      %329 = vst.msk [vmem:[%s316 + $0x180] sm:$0xff] %vm306, 0.0
      %330 = vst.msk [vmem:[%s316 + $0x1a0] sm:$0xff] %vm306, 0.0
      %331 = vst.msk [vmem:[%s316 + $0x1c0] sm:$0xff] %vm306, 0.0
      %332 = vst.msk [vmem:[%s316 + $0x1e0] sm:$0xff] %vm306, 0.0
      %333 = vst.msk [vmem:[%s316 + $0x18] sm:$0xff] %vm306, 0.0
      %334 = vst.msk [vmem:[%s316 + $0x38] sm:$0xff] %vm306, 0.0
      %335 = vst.msk [vmem:[%s316 + $0x58] sm:$0xff] %vm306, 0.0
      %336 = vst.msk [vmem:[%s316 + $0x78] sm:$0xff] %vm306, 0.0
      %337 = vst.msk [vmem:[%s316 + $0x98] sm:$0xff] %vm306, 0.0
      %338 = vst.msk [vmem:[%s316 + $0xb8] sm:$0xff] %vm306, 0.0
      %339 = vst.msk [vmem:[%s316 + $0xd8] sm:$0xff] %vm306, 0.0
      %340 = vst.msk [vmem:[%s316 + $0xf8] sm:$0xff] %vm306, 0.0
      %341 = vst.msk [vmem:[%s316 + $0x118] sm:$0xff] %vm306, 0.0
      %342 = vst.msk [vmem:[%s316 + $0x138] sm:$0xff] %vm306, 0.0
      %343 = vst.msk [vmem:[%s316 + $0x158] sm:$0xff] %vm306, 0.0
      %344 = vst.msk [vmem:[%s316 + $0x178] sm:$0xff] %vm306, 0.0
      %345 = vst.msk [vmem:[%s316 + $0x198] sm:$0xff] %vm306, 0.0
      %346 = vst.msk [vmem:[%s316 + $0x1b8] sm:$0xff] %vm306, 0.0
      %347 = vst.msk [vmem:[%s316 + $0x1d8] sm:$0xff] %vm306, 0.0
      %348 = vst.msk [vmem:[%s316 + $0x1f8] sm:$0xff] %vm306, 0.0
      %v349 = vld [vmem:[%s300] sm:$0xff]
      %v350 = vld [vmem:[%s300 + $0x8] sm:$0xff]
      %v351 = vld [vmem:[%s300 + $0x10] sm:$0xff]
      %v352 = vld [vmem:[%s300 + $0x18] sm:$0xff]
      %v353 = vld [vmem:[%s300 + $0x20] sm:$0xff]
      %v354 = vld [vmem:[%s300 + $0x28] sm:$0xff]
      %v355 = vld [vmem:[%s300 + $0x30] sm:$0xff]
      %v356 = vld [vmem:[%s300 + $0x38] sm:$0xff]
      %v357 = vld [vmem:[%s300 + $0x40] sm:$0xff]
      %v358 = vld [vmem:[%s300 + $0x48] sm:$0xff]
      %v359 = vld [vmem:[%s300 + $0x50] sm:$0xff]
      %v360 = vld [vmem:[%s300 + $0x58] sm:$0xff]
      %v361 = vld [vmem:[%s300 + $0x60] sm:$0xff]
      %v362 = vld [vmem:[%s300 + $0x68] sm:$0xff]
      %v363 = vld [vmem:[%s300 + $0x70] sm:$0xff]
      %v364 = vld [vmem:[%s300 + $0x78] sm:$0xff]
      %v365 = vld [vmem:[%s300 + $0x80] sm:$0xff]
      %v366 = vld [vmem:[%s300 + $0x88] sm:$0xff]
      %v367 = vld [vmem:[%s300 + $0x90] sm:$0xff]
      %v368 = vld [vmem:[%s300 + $0x98] sm:$0xff]
      %v369 = vld [vmem:[%s300 + $0xa0] sm:$0xff]
      %v370 = vld [vmem:[%s300 + $0xa8] sm:$0xff]
      %v371 = vld [vmem:[%s300 + $0xb0] sm:$0xff]
      %v372 = vld [vmem:[%s300 + $0xb8] sm:$0xff]
      %v373 = vld [vmem:[%s300 + $0xc0] sm:$0xff]
      %v374 = vld [vmem:[%s300 + $0xc8] sm:$0xff]
      %v375 = vld [vmem:[%s300 + $0xd0] sm:$0xff]
      %v376 = vld [vmem:[%s300 + $0xd8] sm:$0xff]
      %v377 = vld [vmem:[%s300 + $0xe0] sm:$0xff]
      %v378 = vld [vmem:[%s300 + $0xe8] sm:$0xff]
      %v379 = vld [vmem:[%s300 + $0xf0] sm:$0xff]
      %v380 = vld [vmem:[%s300 + $0xf8] sm:$0xff]
      %v381 = vld [vmem:[%s1] sm:$0xff]
      %v382 = vld [vmem:[%s2] sm:$0x1]
      %v384 = vlaneseq
      %v385 = vshrl.u32 %v384, 7
      %v386 = vsub.s32 0, %v385
      %v387 = vrot.slane %v382, %v386
      %vm389 = vcmask 64512
      %v391 = vsel %vm389, %v349, 0
      %v394 = vsel %vm389, %v350, 0
      %v397 = vsel %vm389, %v351, 0
      %v400 = vsel %vm389, %v352, 0
      %v403 = vsel %vm389, %v353, 0
      %v406 = vsel %vm389, %v354, 0
      %v409 = vsel %vm389, %v355, 0
      %v412 = vsel %vm389, %v356, 0
      %v415 = vsel %vm389, %v357, 0
      %v418 = vsel %vm389, %v358, 0
      %v421 = vsel %vm389, %v359, 0
      %v424 = vsel %vm389, %v360, 0
      %v427 = vsel %vm389, %v361, 0
      %v430 = vsel %vm389, %v362, 0
      %v433 = vsel %vm389, %v363, 0
      %v436 = vsel %vm389, %v364, 0
      %v439 = vsel %vm389, %v365, 0
      %v442 = vsel %vm389, %v366, 0
      %v445 = vsel %vm389, %v367, 0
      %v448 = vsel %vm389, %v368, 0
      %v451 = vsel %vm389, %v369, 0
      %v454 = vsel %vm389, %v370, 0
      %v457 = vsel %vm389, %v371, 0
      %v460 = vsel %vm389, %v372, 0
      %v463 = vsel %vm389, %v373, 0
      %v466 = vsel %vm389, %v374, 0
      %v469 = vsel %vm389, %v375, 0
      %v472 = vsel %vm389, %v376, 0
      %v475 = vsel %vm389, %v377, 0
      %v478 = vsel %vm389, %v378, 0
      %v481 = vsel %vm389, %v379, 0
      %v484 = vsel %vm389, %v380, 0
      %486 = vmatprep.subr.mxu0 0.0
      %487 = vmatpush1.msra.mxu0 0.0
      %488 = vmatprep.subr.mxu0 0.0
      %489 = vmatpush1.msra.mxu0 0.0
      %490 = vmatprep.subr.mxu0 0.0
      %491 = vmatpush1.msra.mxu0 0.0
      %492 = vmatprep.subr.mxu0 0.0
      %493 = vmatpush1.msra.mxu0 0.0
      %494 = vmatprep.subr.mxu0 0.0
      %495 = vmatpush1.msra.mxu0 0.0
      %496 = vmatprep.subr.mxu0 0.0
      %497 = vmatpush1.msra.mxu0 0.0
      %498 = vmatprep.subr.mxu0 0.0
      %499 = vmatpush1.msra.mxu0 0.0
      %500 = vmatprep.subr.mxu0 0.0
      %501 = vmatpush1.msra.mxu0 0.0
      %502 = vmatprep.subr.mxu0 0.0
      %503 = vmatpush1.msra.mxu0 0.0
      %504 = vmatprep.subr.mxu0 0.0
      %505 = vmatpush1.msra.mxu0 0.0
      %506 = vmatprep.subr.mxu0 0.0
      %507 = vmatpush1.msra.mxu0 0.0
      %508 = vmatprep.subr.mxu0 0.0
      %509 = vmatpush1.msra.mxu0 0.0
      %510 = vmatprep.subr.mxu0 0.0
      %511 = vmatpush1.msra.mxu0 0.0
      %512 = vmatprep.subr.mxu0 0.0
      %513 = vmatpush1.msra.mxu0 0.0
      %514 = vmatprep.subr.mxu0 0.0
      %515 = vmatpush1.msra.mxu0 0.0
      %516 = vmatprep.subr.mxu0 0.0
      %517 = vmatpush1.msra.mxu0 %v381
      %518 = vmatprep.subr.mxu0 0.0
      %519 = vmatpush2.msra.mxu0 0.0
      %520 = vmatprep.subr.mxu0 0.0
      %521 = vmatpush2.msra.mxu0 0.0
      %522 = vmatprep.subr.mxu0 0.0
      %523 = vmatpush2.msra.mxu0 0.0
      %524 = vmatprep.subr.mxu0 0.0
      %525 = vmatpush2.msra.mxu0 0.0
      %526 = vmatprep.subr.mxu0 0.0
      %527 = vmatpush2.msra.mxu0 0.0
      %528 = vmatprep.subr.mxu0 0.0
      %529 = vmatpush2.msra.mxu0 0.0
      %530 = vmatprep.subr.mxu0 0.0
      %531 = vmatpush2.msra.mxu0 0.0
      %532 = vmatprep.subr.mxu0 0.0
      %533 = vmatpush2.msra.mxu0 0.0
      %534 = vmatprep.subr.mxu0 0.0
      %535 = vmatpush2.msra.mxu0 0.0
      %536 = vmatprep.subr.mxu0 0.0
      %537 = vmatpush2.msra.mxu0 0.0
      %538 = vmatprep.subr.mxu0 0.0
      %539 = vmatpush2.msra.mxu0 0.0
      %540 = vmatprep.subr.mxu0 0.0
      %541 = vmatpush2.msra.mxu0 0.0
      %542 = vmatprep.subr.mxu0 0.0
      %543 = vmatpush2.msra.mxu0 0.0
      %544 = vmatprep.subr.mxu0 0.0
      %545 = vmatpush2.msra.mxu0 0.0
      %546 = vmatprep.subr.mxu0 0.0
      %547 = vmatpush2.msra.mxu0 0.0
      %548 = vmatprep.subr.mxu0 0.0
      %549 = vmatpush2.msra.mxu0 0.0
      %550 = vmatprep.mubr.f32.mxu0 0.0
      %551 = vmatmul.mubr.f32.gmra.mxu0 %v391
      %v552 = vpop.f32.mrf.mxu0
      %v553 = vadd.f32 %v387, %v552
      %v554 = vpop.f32.mrf.mxu0
      %555 = vmatprep.mubr.f32.mxu0 0.0
      %556 = vmatmul.mubr.f32.gmra.mxu0 %v394
      %v557 = vpop.f32.mrf.mxu0
      %v558 = vadd.f32 %v387, %v557
      %v559 = vpop.f32.mrf.mxu0
      %560 = vmatprep.mubr.f32.mxu0 0.0
      %561 = vmatmul.mubr.f32.gmra.mxu0 %v397
      %v562 = vpop.f32.mrf.mxu0
      %v563 = vadd.f32 %v387, %v562
      %v564 = vpop.f32.mrf.mxu0
      %565 = vmatprep.mubr.f32.mxu0 0.0
      %566 = vmatmul.mubr.f32.gmra.mxu0 %v400
      %v567 = vpop.f32.mrf.mxu0
      %v568 = vadd.f32 %v387, %v567
      %v569 = vpop.f32.mrf.mxu0
      %570 = vmatprep.mubr.f32.mxu0 0.0
      %571 = vmatmul.mubr.f32.gmra.mxu0 %v403
      %v572 = vpop.f32.mrf.mxu0
      %v573 = vadd.f32 %v387, %v572
      %v574 = vpop.f32.mrf.mxu0
      %575 = vmatprep.mubr.f32.mxu0 0.0
      %576 = vmatmul.mubr.f32.gmra.mxu0 %v406
      %v577 = vpop.f32.mrf.mxu0
      %v578 = vadd.f32 %v387, %v577
      %v579 = vpop.f32.mrf.mxu0
      %580 = vmatprep.mubr.f32.mxu0 0.0
      %581 = vmatmul.mubr.f32.gmra.mxu0 %v409
      %v582 = vpop.f32.mrf.mxu0
      %v583 = vadd.f32 %v387, %v582
      %v584 = vpop.f32.mrf.mxu0
      %585 = vmatprep.mubr.f32.mxu0 0.0
      %586 = vmatmul.mubr.f32.gmra.mxu0 %v412
      %v587 = vpop.f32.mrf.mxu0
      %v588 = vadd.f32 %v387, %v587
      %v589 = vpop.f32.mrf.mxu0
      %590 = vmatprep.mubr.f32.mxu0 0.0
      %591 = vmatmul.mubr.f32.gmra.mxu0 %v415
      %v592 = vpop.f32.mrf.mxu0
      %v593 = vadd.f32 %v387, %v592
      %v594 = vpop.f32.mrf.mxu0
      %595 = vmatprep.mubr.f32.mxu0 0.0
      %596 = vmatmul.mubr.f32.gmra.mxu0 %v418
      %v597 = vpop.f32.mrf.mxu0
      %v598 = vadd.f32 %v387, %v597
      %v599 = vpop.f32.mrf.mxu0
      %600 = vmatprep.mubr.f32.mxu0 0.0
      %601 = vmatmul.mubr.f32.gmra.mxu0 %v421
      %v602 = vpop.f32.mrf.mxu0
      %v603 = vadd.f32 %v387, %v602
      %v604 = vpop.f32.mrf.mxu0
      %605 = vmatprep.mubr.f32.mxu0 0.0
      %606 = vmatmul.mubr.f32.gmra.mxu0 %v424
      %v607 = vpop.f32.mrf.mxu0
      %v608 = vadd.f32 %v387, %v607
      %v609 = vpop.f32.mrf.mxu0
      %610 = vmatprep.mubr.f32.mxu0 0.0
      %611 = vmatmul.mubr.f32.gmra.mxu0 %v427
      %v612 = vpop.f32.mrf.mxu0
      %v613 = vadd.f32 %v387, %v612
      %v614 = vpop.f32.mrf.mxu0
      %615 = vmatprep.mubr.f32.mxu0 0.0
      %616 = vmatmul.mubr.f32.gmra.mxu0 %v430
      %v617 = vpop.f32.mrf.mxu0
      %v618 = vadd.f32 %v387, %v617
      %v619 = vpop.f32.mrf.mxu0
      %620 = vmatprep.mubr.f32.mxu0 0.0
      %621 = vmatmul.mubr.f32.gmra.mxu0 %v433
      %v622 = vpop.f32.mrf.mxu0
      %v623 = vadd.f32 %v387, %v622
      %v624 = vpop.f32.mrf.mxu0
      %625 = vmatprep.mubr.f32.mxu0 0.0
      %626 = vmatmul.mubr.f32.gmra.mxu0 %v436
      %v627 = vpop.f32.mrf.mxu0
      %v628 = vadd.f32 %v387, %v627
      %v629 = vpop.f32.mrf.mxu0
      %630 = vmatprep.mubr.f32.mxu0 0.0
      %631 = vmatmul.mubr.f32.gmra.mxu0 %v439
      %v632 = vpop.f32.mrf.mxu0
      %v633 = vadd.f32 %v387, %v632
      %v634 = vpop.f32.mrf.mxu0
      %635 = vmatprep.mubr.f32.mxu0 0.0
      %636 = vmatmul.mubr.f32.gmra.mxu0 %v442
      %v637 = vpop.f32.mrf.mxu0
      %v638 = vadd.f32 %v387, %v637
      %v639 = vpop.f32.mrf.mxu0
      %640 = vmatprep.mubr.f32.mxu0 0.0
      %641 = vmatmul.mubr.f32.gmra.mxu0 %v445
      %v642 = vpop.f32.mrf.mxu0
      %v643 = vadd.f32 %v387, %v642
      %v644 = vpop.f32.mrf.mxu0
      %645 = vmatprep.mubr.f32.mxu0 0.0
      %646 = vmatmul.mubr.f32.gmra.mxu0 %v448
      %v647 = vpop.f32.mrf.mxu0
      %v648 = vadd.f32 %v387, %v647
      %v649 = vpop.f32.mrf.mxu0
      %650 = vmatprep.mubr.f32.mxu0 0.0
      %651 = vmatmul.mubr.f32.gmra.mxu0 %v451
      %v652 = vpop.f32.mrf.mxu0
      %v653 = vadd.f32 %v387, %v652
      %v654 = vpop.f32.mrf.mxu0
      %655 = vmatprep.mubr.f32.mxu0 0.0
      %656 = vmatmul.mubr.f32.gmra.mxu0 %v454
      %v657 = vpop.f32.mrf.mxu0
      %v658 = vadd.f32 %v387, %v657
      %v659 = vpop.f32.mrf.mxu0
      %660 = vmatprep.mubr.f32.mxu0 0.0
      %661 = vmatmul.mubr.f32.gmra.mxu0 %v457
      %v662 = vpop.f32.mrf.mxu0
      %v663 = vadd.f32 %v387, %v662
      %v664 = vpop.f32.mrf.mxu0
      %665 = vmatprep.mubr.f32.mxu0 0.0
      %666 = vmatmul.mubr.f32.gmra.mxu0 %v460
      %v667 = vpop.f32.mrf.mxu0
      %v668 = vadd.f32 %v387, %v667
      %v669 = vpop.f32.mrf.mxu0
      %670 = vmatprep.mubr.f32.mxu0 0.0
      %671 = vmatmul.mubr.f32.gmra.mxu0 %v463
      %v672 = vpop.f32.mrf.mxu0
      %v673 = vadd.f32 %v387, %v672
      %v674 = vpop.f32.mrf.mxu0
      %675 = vmatprep.mubr.f32.mxu0 0.0
      %676 = vmatmul.mubr.f32.gmra.mxu0 %v466
      %v677 = vpop.f32.mrf.mxu0
      %v678 = vadd.f32 %v387, %v677
      %v679 = vpop.f32.mrf.mxu0
      %680 = vmatprep.mubr.f32.mxu0 0.0
      %681 = vmatmul.mubr.f32.gmra.mxu0 %v469
      %v682 = vpop.f32.mrf.mxu0
      %v683 = vadd.f32 %v387, %v682
      %v684 = vpop.f32.mrf.mxu0
      %685 = vmatprep.mubr.f32.mxu0 0.0
      %686 = vmatmul.mubr.f32.gmra.mxu0 %v472
      %v687 = vpop.f32.mrf.mxu0
      %v688 = vadd.f32 %v387, %v687
      %v689 = vpop.f32.mrf.mxu0
      %690 = vmatprep.mubr.f32.mxu0 0.0
      %691 = vmatmul.mubr.f32.gmra.mxu0 %v475
      %v692 = vpop.f32.mrf.mxu0
      %v693 = vadd.f32 %v387, %v692
      %v694 = vpop.f32.mrf.mxu0
      %695 = vmatprep.mubr.f32.mxu0 0.0
      %696 = vmatmul.mubr.f32.gmra.mxu0 %v478
      %v697 = vpop.f32.mrf.mxu0
      %v698 = vadd.f32 %v387, %v697
      %v699 = vpop.f32.mrf.mxu0
      %700 = vmatprep.mubr.f32.mxu0 0.0
      %701 = vmatmul.mubr.f32.gmra.mxu0 %v481
      %v702 = vpop.f32.mrf.mxu0
      %v703 = vadd.f32 %v387, %v702
      %v704 = vpop.f32.mrf.mxu0
      %705 = vmatprep.mubr.f32.mxu0 0.0
      %706 = vmatmul.mubr.f32.gmra.mxu0 %v484
      %v707 = vpop.f32.mrf.mxu0
      %v708 = vadd.f32 %v387, %v707
      %v709 = vpop.f32.mrf.mxu0
      %710 = vdwg.mxu0
      %v711 = vmax.f32 %v553, 0.0
      %v712 = vmax.f32 %v558, 0.0
      %v713 = vmax.f32 %v563, 0.0
      %v714 = vmax.f32 %v568, 0.0
      %v715 = vmax.f32 %v573, 0.0
      %v716 = vmax.f32 %v578, 0.0
      %v717 = vmax.f32 %v583, 0.0
      %v718 = vmax.f32 %v588, 0.0
      %v719 = vmax.f32 %v593, 0.0
      %v720 = vmax.f32 %v598, 0.0
      %v721 = vmax.f32 %v603, 0.0
      %v722 = vmax.f32 %v608, 0.0
      %v723 = vmax.f32 %v613, 0.0
      %v724 = vmax.f32 %v618, 0.0
      %v725 = vmax.f32 %v623, 0.0
      %v726 = vmax.f32 %v628, 0.0
      %v727 = vmax.f32 %v633, 0.0
      %v728 = vmax.f32 %v638, 0.0
      %v729 = vmax.f32 %v643, 0.0
      %v730 = vmax.f32 %v648, 0.0
      %v731 = vmax.f32 %v653, 0.0
      %v732 = vmax.f32 %v658, 0.0
      %v733 = vmax.f32 %v663, 0.0
      %v734 = vmax.f32 %v668, 0.0
      %v735 = vmax.f32 %v673, 0.0
      %v736 = vmax.f32 %v678, 0.0
      %v737 = vmax.f32 %v683, 0.0
      %v738 = vmax.f32 %v688, 0.0
      %v739 = vmax.f32 %v693, 0.0
      %v740 = vmax.f32 %v698, 0.0
      %v741 = vmax.f32 %v703, 0.0
      %v742 = vmax.f32 %v708, 0.0
      %v743 = vmin.f32 %v711, 6.0
      %v744 = vmin.f32 %v712, 6.0
      %v745 = vmin.f32 %v713, 6.0
      %v746 = vmin.f32 %v714, 6.0
      %v747 = vmin.f32 %v715, 6.0
      %v748 = vmin.f32 %v716, 6.0
      %v749 = vmin.f32 %v717, 6.0
      %v750 = vmin.f32 %v718, 6.0
      %v751 = vmin.f32 %v719, 6.0
      %v752 = vmin.f32 %v720, 6.0
      %v753 = vmin.f32 %v721, 6.0
      %v754 = vmin.f32 %v722, 6.0
      %v755 = vmin.f32 %v723, 6.0
      %v756 = vmin.f32 %v724, 6.0
      %v757 = vmin.f32 %v725, 6.0
      %v758 = vmin.f32 %v726, 6.0
      %v759 = vmin.f32 %v727, 6.0
      %v760 = vmin.f32 %v728, 6.0
      %v761 = vmin.f32 %v729, 6.0
      %v762 = vmin.f32 %v730, 6.0
      %v763 = vmin.f32 %v731, 6.0
      %v764 = vmin.f32 %v732, 6.0
      %v765 = vmin.f32 %v733, 6.0
      %v766 = vmin.f32 %v734, 6.0
      %v767 = vmin.f32 %v735, 6.0
      %v768 = vmin.f32 %v736, 6.0
      %v769 = vmin.f32 %v737, 6.0
      %v770 = vmin.f32 %v738, 6.0
      %v771 = vmin.f32 %v739, 6.0
      %v772 = vmin.f32 %v740, 6.0
      %v773 = vmin.f32 %v741, 6.0
      %v774 = vmin.f32 %v742, 6.0
      %775 = vst.msk [vmem:[%s316 + $0x8] sm:$0xff] %vm306, %v743
      %776 = vst.msk [vmem:[%s316 + $0x10] sm:$0xff] %vm306, %v744
      %777 = vst.msk [vmem:[%s316 + $0x28] sm:$0xff] %vm306, %v745
      %778 = vst.msk [vmem:[%s316 + $0x30] sm:$0xff] %vm306, %v746
      %779 = vst.msk [vmem:[%s316 + $0x48] sm:$0xff] %vm306, %v747
      %780 = vst.msk [vmem:[%s316 + $0x50] sm:$0xff] %vm306, %v748
      %781 = vst.msk [vmem:[%s316 + $0x68] sm:$0xff] %vm306, %v749
      %782 = vst.msk [vmem:[%s316 + $0x70] sm:$0xff] %vm306, %v750
      %783 = vst.msk [vmem:[%s316 + $0x88] sm:$0xff] %vm306, %v751
      %784 = vst.msk [vmem:[%s316 + $0x90] sm:$0xff] %vm306, %v752
      %785 = vst.msk [vmem:[%s316 + $0xa8] sm:$0xff] %vm306, %v753
      %786 = vst.msk [vmem:[%s316 + $0xb0] sm:$0xff] %vm306, %v754
      %787 = vst.msk [vmem:[%s316 + $0xc8] sm:$0xff] %vm306, %v755
      %788 = vst.msk [vmem:[%s316 + $0xd0] sm:$0xff] %vm306, %v756
      %789 = vst.msk [vmem:[%s316 + $0xe8] sm:$0xff] %vm306, %v757
      %790 = vst.msk [vmem:[%s316 + $0xf0] sm:$0xff] %vm306, %v758
      %791 = vst.msk [vmem:[%s316 + $0x108] sm:$0xff] %vm306, %v759
      %792 = vst.msk [vmem:[%s316 + $0x110] sm:$0xff] %vm306, %v760
      %793 = vst.msk [vmem:[%s316 + $0x128] sm:$0xff] %vm306, %v761
      %794 = vst.msk [vmem:[%s316 + $0x130] sm:$0xff] %vm306, %v762
      %795 = vst.msk [vmem:[%s316 + $0x148] sm:$0xff] %vm306, %v763
      %796 = vst.msk [vmem:[%s316 + $0x150] sm:$0xff] %vm306, %v764
      %797 = vst.msk [vmem:[%s316 + $0x168] sm:$0xff] %vm306, %v765
      %798 = vst.msk [vmem:[%s316 + $0x170] sm:$0xff] %vm306, %v766
      %799 = vst.msk [vmem:[%s316 + $0x188] sm:$0xff] %vm306, %v767
      %800 = vst.msk [vmem:[%s316 + $0x190] sm:$0xff] %vm306, %v768
      %801 = vst.msk [vmem:[%s316 + $0x1a8] sm:$0xff] %vm306, %v769
      %802 = vst.msk [vmem:[%s316 + $0x1b0] sm:$0xff] %vm306, %v770
      %803 = vst.msk [vmem:[%s316 + $0x1c8] sm:$0xff] %vm306, %v771
      %804 = vst.msk [vmem:[%s316 + $0x1d0] sm:$0xff] %vm306, %v772
      %805 = vst.msk [vmem:[%s316 + $0x1e8] sm:$0xff] %vm306, %v773
      %806 = vst.msk [vmem:[%s316 + $0x1f0] sm:$0xff] %vm306, %v774
      %v807 = vld [vmem:[%s3] sm:$0xff]
      %v808 = vld [vmem:[%s3 + $0x8] sm:$0x1]
      %v809 = vld [vmem:[#allocation2 + $0x7] sm:$0xff]
      %v810 = vld [vmem:[#allocation2 + $0xf] sm:$0xff]
      %v811 = vld [vmem:[#allocation2 + $0x27] sm:$0xff]
      %v812 = vld [vmem:[#allocation2 + $0x2f] sm:$0xff]
      %v813 = vld [vmem:[#allocation2 + $0x47] sm:$0xff]
      %v814 = vld [vmem:[#allocation2 + $0x4f] sm:$0xff]
      %v815 = vld [vmem:[#allocation2 + $0x67] sm:$0xff]
      %v816 = vld [vmem:[#allocation2 + $0x6f] sm:$0xff]
      %v817 = vld [vmem:[#allocation2 + $0x87] sm:$0xff]
      %v818 = vld [vmem:[#allocation2 + $0x8f] sm:$0xff]
      %v819 = vld [vmem:[#allocation2 + $0xa7] sm:$0xff]
      %v820 = vld [vmem:[#allocation2 + $0xaf] sm:$0xff]
      %v821 = vld [vmem:[#allocation2 + $0xc7] sm:$0xff]
      %v822 = vld [vmem:[#allocation2 + $0xcf] sm:$0xff]
      %v823 = vld [vmem:[#allocation2 + $0xe7] sm:$0xff]
      %v824 = vld [vmem:[#allocation2 + $0xef] sm:$0xff]
      %v825 = vld [vmem:[#allocation2 + $0x107] sm:$0xff]
      %v826 = vld [vmem:[#allocation2 + $0x10f] sm:$0xff]
      %v827 = vld [vmem:[#allocation2 + $0x127] sm:$0xff]
      %v828 = vld [vmem:[#allocation2 + $0x12f] sm:$0xff]
      %v829 = vld [vmem:[#allocation2 + $0x147] sm:$0xff]
      %v830 = vld [vmem:[#allocation2 + $0x14f] sm:$0xff]
      %v831 = vld [vmem:[#allocation2 + $0x167] sm:$0xff]
      %v832 = vld [vmem:[#allocation2 + $0x16f] sm:$0xff]
      %v833 = vld [vmem:[#allocation2 + $0x187] sm:$0xff]
      %v834 = vld [vmem:[#allocation2 + $0x18f] sm:$0xff]
      %v835 = vld [vmem:[#allocation2 + $0x1a7] sm:$0xff]
      %v836 = vld [vmem:[#allocation2 + $0x1af] sm:$0xff]
      %v837 = vld [vmem:[#allocation2 + $0x1c7] sm:$0xff]
      %v838 = vld [vmem:[#allocation2 + $0x1cf] sm:$0xff]
      %v839 = vld [vmem:[#allocation2 + $0x1e7] sm:$0xff]
      %v840 = vld [vmem:[#allocation2 + $0x1ef] sm:$0xff]
      %v841 = vlaneseq
      %v842 = vshrl.u32 %v841, 7
      %v843 = vsub.s32 0, %v842
      %v844 = vrot.slane %v807, %v843
      %v845 = vmul.f32 %v809, %v844
      %v846 = vmul.f32 %v810, %v844
      %v847 = vmul.f32 %v811, %v844
      %v848 = vmul.f32 %v812, %v844
      %v849 = vmul.f32 %v813, %v844
      %v850 = vmul.f32 %v814, %v844
      %v851 = vmul.f32 %v815, %v844
      %v852 = vmul.f32 %v816, %v844
      %v853 = vmul.f32 %v817, %v844
      %v854 = vmul.f32 %v818, %v844
      %v855 = vmul.f32 %v819, %v844
      %v856 = vmul.f32 %v820, %v844
      %v857 = vmul.f32 %v821, %v844
      %v858 = vmul.f32 %v822, %v844
      %v859 = vmul.f32 %v823, %v844
      %v860 = vmul.f32 %v824, %v844
      %v861 = vmul.f32 %v825, %v844
      %v862 = vmul.f32 %v826, %v844
      %v863 = vmul.f32 %v827, %v844
      %v864 = vmul.f32 %v828, %v844
      %v865 = vmul.f32 %v829, %v844
      %v866 = vmul.f32 %v830, %v844
      %v867 = vmul.f32 %v831, %v844
      %v868 = vmul.f32 %v832, %v844
      %v869 = vmul.f32 %v833, %v844
      %v870 = vmul.f32 %v834, %v844
      %v871 = vmul.f32 %v835, %v844
      %v872 = vmul.f32 %v836, %v844
      %v873 = vmul.f32 %v837, %v844
      %v874 = vmul.f32 %v838, %v844
      %v875 = vmul.f32 %v839, %v844
      %v876 = vmul.f32 %v840, %v844
      %v877 = vadd.f32 %v845, 0.0
      %v878 = vadd.f32 %v846, 0.0
      %v879 = vadd.f32 %v847, 0.0
      %v880 = vadd.f32 %v848, 0.0
      %v881 = vadd.f32 %v849, 0.0
      %v882 = vadd.f32 %v850, 0.0
      %v883 = vadd.f32 %v851, 0.0
      %v884 = vadd.f32 %v852, 0.0
      %v885 = vadd.f32 %v853, 0.0
      %v886 = vadd.f32 %v854, 0.0
      %v887 = vadd.f32 %v855, 0.0
      %v888 = vadd.f32 %v856, 0.0
      %v889 = vadd.f32 %v857, 0.0
      %v890 = vadd.f32 %v858, 0.0
      %v891 = vadd.f32 %v859, 0.0
      %v892 = vadd.f32 %v860, 0.0
      %v893 = vadd.f32 %v861, 0.0
      %v894 = vadd.f32 %v862, 0.0
      %v895 = vadd.f32 %v863, 0.0
      %v896 = vadd.f32 %v864, 0.0
      %v897 = vadd.f32 %v865, 0.0
      %v898 = vadd.f32 %v866, 0.0
      %v899 = vadd.f32 %v867, 0.0
      %v900 = vadd.f32 %v868, 0.0
      %v901 = vadd.f32 %v869, 0.0
      %v902 = vadd.f32 %v870, 0.0
      %v903 = vadd.f32 %v871, 0.0
      %v904 = vadd.f32 %v872, 0.0
      %v905 = vadd.f32 %v873, 0.0
      %v906 = vadd.f32 %v874, 0.0
      %v907 = vadd.f32 %v875, 0.0
      %v908 = vadd.f32 %v876, 0.0
      %v909 = vld [vmem:[#allocation2 + $0x8] sm:$0xff]
      %v910 = vld [vmem:[#allocation2 + $0x10] sm:$0xff]
      %v911 = vld [vmem:[#allocation2 + $0x28] sm:$0xff]
      %v912 = vld [vmem:[#allocation2 + $0x30] sm:$0xff]
      %v913 = vld [vmem:[#allocation2 + $0x48] sm:$0xff]
      %v914 = vld [vmem:[#allocation2 + $0x50] sm:$0xff]
      %v915 = vld [vmem:[#allocation2 + $0x68] sm:$0xff]
      %v916 = vld [vmem:[#allocation2 + $0x70] sm:$0xff]
      %v917 = vld [vmem:[#allocation2 + $0x88] sm:$0xff]
      %v918 = vld [vmem:[#allocation2 + $0x90] sm:$0xff]
      %v919 = vld [vmem:[#allocation2 + $0xa8] sm:$0xff]
      %v920 = vld [vmem:[#allocation2 + $0xb0] sm:$0xff]
      %v921 = vld [vmem:[#allocation2 + $0xc8] sm:$0xff]
      %v922 = vld [vmem:[#allocation2 + $0xd0] sm:$0xff]
      %v923 = vld [vmem:[#allocation2 + $0xe8] sm:$0xff]
      %v924 = vld [vmem:[#allocation2 + $0xf0] sm:$0xff]
      %v925 = vld [vmem:[#allocation2 + $0x108] sm:$0xff]
      %v926 = vld [vmem:[#allocation2 + $0x110] sm:$0xff]
      %v927 = vld [vmem:[#allocation2 + $0x128] sm:$0xff]
      %v928 = vld [vmem:[#allocation2 + $0x130] sm:$0xff]
      %v929 = vld [vmem:[#allocation2 + $0x148] sm:$0xff]
      %v930 = vld [vmem:[#allocation2 + $0x150] sm:$0xff]
      %v931 = vld [vmem:[#allocation2 + $0x168] sm:$0xff]
      %v932 = vld [vmem:[#allocation2 + $0x170] sm:$0xff]
      %v933 = vld [vmem:[#allocation2 + $0x188] sm:$0xff]
      %v934 = vld [vmem:[#allocation2 + $0x190] sm:$0xff]
      %v935 = vld [vmem:[#allocation2 + $0x1a8] sm:$0xff]
      %v936 = vld [vmem:[#allocation2 + $0x1b0] sm:$0xff]
      %v937 = vld [vmem:[#allocation2 + $0x1c8] sm:$0xff]
      %v938 = vld [vmem:[#allocation2 + $0x1d0] sm:$0xff]
      %v939 = vld [vmem:[#allocation2 + $0x1e8] sm:$0xff]
      %v940 = vld [vmem:[#allocation2 + $0x1f0] sm:$0xff]
      %v941 = vlaneseq
      %v942 = vshrl.u32 %v941, 7
      %v943 = vsub.s32 1, %v942
      %v944 = vrot.slane %v807, %v943
      %v945 = vmul.f32 %v909, %v944
      %v946 = vmul.f32 %v910, %v944
      %v947 = vmul.f32 %v911, %v944
      %v948 = vmul.f32 %v912, %v944
      %v949 = vmul.f32 %v913, %v944
      %v950 = vmul.f32 %v914, %v944
      %v951 = vmul.f32 %v915, %v944
      %v952 = vmul.f32 %v916, %v944
      %v953 = vmul.f32 %v917, %v944
      %v954 = vmul.f32 %v918, %v944
      %v955 = vmul.f32 %v919, %v944
      %v956 = vmul.f32 %v920, %v944
      %v957 = vmul.f32 %v921, %v944
      %v958 = vmul.f32 %v922, %v944
      %v959 = vmul.f32 %v923, %v944
      %v960 = vmul.f32 %v924, %v944
      %v961 = vmul.f32 %v925, %v944
      %v962 = vmul.f32 %v926, %v944
      %v963 = vmul.f32 %v927, %v944
      %v964 = vmul.f32 %v928, %v944
      %v965 = vmul.f32 %v929, %v944
      %v966 = vmul.f32 %v930, %v944
      %v967 = vmul.f32 %v931, %v944
      %v968 = vmul.f32 %v932, %v944
      %v969 = vmul.f32 %v933, %v944
      %v970 = vmul.f32 %v934, %v944
      %v971 = vmul.f32 %v935, %v944
      %v972 = vmul.f32 %v936, %v944
      %v973 = vmul.f32 %v937, %v944
      %v974 = vmul.f32 %v938, %v944
      %v975 = vmul.f32 %v939, %v944
      %v976 = vmul.f32 %v940, %v944
      %v977 = vadd.f32 %v877, %v945
      %v978 = vadd.f32 %v878, %v946
      %v979 = vadd.f32 %v879, %v947
      %v980 = vadd.f32 %v880, %v948
      %v981 = vadd.f32 %v881, %v949
      %v982 = vadd.f32 %v882, %v950
      %v983 = vadd.f32 %v883, %v951
      %v984 = vadd.f32 %v884, %v952
      %v985 = vadd.f32 %v885, %v953
      %v986 = vadd.f32 %v886, %v954
      %v987 = vadd.f32 %v887, %v955
      %v988 = vadd.f32 %v888, %v956
      %v989 = vadd.f32 %v889, %v957
      %v990 = vadd.f32 %v890, %v958
      %v991 = vadd.f32 %v891, %v959
      %v992 = vadd.f32 %v892, %v960
      %v993 = vadd.f32 %v893, %v961
      %v994 = vadd.f32 %v894, %v962
      %v995 = vadd.f32 %v895, %v963
      %v996 = vadd.f32 %v896, %v964
      %v997 = vadd.f32 %v897, %v965
      %v998 = vadd.f32 %v898, %v966
      %v999 = vadd.f32 %v899, %v967
      %v1000 = vadd.f32 %v900, %v968
      %v1001 = vadd.f32 %v901, %v969
      %v1002 = vadd.f32 %v902, %v970
      %v1003 = vadd.f32 %v903, %v971
      %v1004 = vadd.f32 %v904, %v972
      %v1005 = vadd.f32 %v905, %v973
      %v1006 = vadd.f32 %v906, %v974
      %v1007 = vadd.f32 %v907, %v975
      %v1008 = vadd.f32 %v908, %v976
      %v1009 = vld [vmem:[#allocation2 + $0x9] sm:$0xff]
      %v1010 = vld [vmem:[#allocation2 + $0x11] sm:$0xff]
      %v1011 = vld [vmem:[#allocation2 + $0x29] sm:$0xff]
      %v1012 = vld [vmem:[#allocation2 + $0x31] sm:$0xff]
      %v1013 = vld [vmem:[#allocation2 + $0x49] sm:$0xff]
      %v1014 = vld [vmem:[#allocation2 + $0x51] sm:$0xff]
      %v1015 = vld [vmem:[#allocation2 + $0x69] sm:$0xff]
      %v1016 = vld [vmem:[#allocation2 + $0x71] sm:$0xff]
      %v1017 = vld [vmem:[#allocation2 + $0x89] sm:$0xff]
      %v1018 = vld [vmem:[#allocation2 + $0x91] sm:$0xff]
      %v1019 = vld [vmem:[#allocation2 + $0xa9] sm:$0xff]
      %v1020 = vld [vmem:[#allocation2 + $0xb1] sm:$0xff]
      %v1021 = vld [vmem:[#allocation2 + $0xc9] sm:$0xff]
      %v1022 = vld [vmem:[#allocation2 + $0xd1] sm:$0xff]
      %v1023 = vld [vmem:[#allocation2 + $0xe9] sm:$0xff]
      %v1024 = vld [vmem:[#allocation2 + $0xf1] sm:$0xff]
      %v1025 = vld [vmem:[#allocation2 + $0x109] sm:$0xff]
      %v1026 = vld [vmem:[#allocation2 + $0x111] sm:$0xff]
      %v1027 = vld [vmem:[#allocation2 + $0x129] sm:$0xff]
      %v1028 = vld [vmem:[#allocation2 + $0x131] sm:$0xff]
      %v1029 = vld [vmem:[#allocation2 + $0x149] sm:$0xff]
      %v1030 = vld [vmem:[#allocation2 + $0x151] sm:$0xff]
      %v1031 = vld [vmem:[#allocation2 + $0x169] sm:$0xff]
      %v1032 = vld [vmem:[#allocation2 + $0x171] sm:$0xff]
      %v1033 = vld [vmem:[#allocation2 + $0x189] sm:$0xff]
      %v1034 = vld [vmem:[#allocation2 + $0x191] sm:$0xff]
      %v1035 = vld [vmem:[#allocation2 + $0x1a9] sm:$0xff]
      %v1036 = vld [vmem:[#allocation2 + $0x1b1] sm:$0xff]
      %v1037 = vld [vmem:[#allocation2 + $0x1c9] sm:$0xff]
      %v1038 = vld [vmem:[#allocation2 + $0x1d1] sm:$0xff]
      %v1039 = vld [vmem:[#allocation2 + $0x1e9] sm:$0xff]
      %v1040 = vld [vmem:[#allocation2 + $0x1f1] sm:$0xff]
      %v1041 = vlaneseq
      %v1042 = vshrl.u32 %v1041, 7
      %v1043 = vsub.s32 2, %v1042
      %v1044 = vrot.slane %v807, %v1043
      %v1045 = vmul.f32 %v1009, %v1044
      %v1046 = vmul.f32 %v1010, %v1044
      %v1047 = vmul.f32 %v1011, %v1044
      %v1048 = vmul.f32 %v1012, %v1044
      %v1049 = vmul.f32 %v1013, %v1044
      %v1050 = vmul.f32 %v1014, %v1044
      %v1051 = vmul.f32 %v1015, %v1044
      %v1052 = vmul.f32 %v1016, %v1044
      %v1053 = vmul.f32 %v1017, %v1044
      %v1054 = vmul.f32 %v1018, %v1044
      %v1055 = vmul.f32 %v1019, %v1044
      %v1056 = vmul.f32 %v1020, %v1044
      %v1057 = vmul.f32 %v1021, %v1044
      %v1058 = vmul.f32 %v1022, %v1044
      %v1059 = vmul.f32 %v1023, %v1044
      %v1060 = vmul.f32 %v1024, %v1044
      %v1061 = vmul.f32 %v1025, %v1044
      %v1062 = vmul.f32 %v1026, %v1044
      %v1063 = vmul.f32 %v1027, %v1044
      %v1064 = vmul.f32 %v1028, %v1044
      %v1065 = vmul.f32 %v1029, %v1044
      %v1066 = vmul.f32 %v1030, %v1044
      %v1067 = vmul.f32 %v1031, %v1044
      %v1068 = vmul.f32 %v1032, %v1044
      %v1069 = vmul.f32 %v1033, %v1044
      %v1070 = vmul.f32 %v1034, %v1044
      %v1071 = vmul.f32 %v1035, %v1044
      %v1072 = vmul.f32 %v1036, %v1044
      %v1073 = vmul.f32 %v1037, %v1044
      %v1074 = vmul.f32 %v1038, %v1044
      %v1075 = vmul.f32 %v1039, %v1044
      %v1076 = vmul.f32 %v1040, %v1044
      %v1077 = vadd.f32 %v977, %v1045
      %v1078 = vadd.f32 %v978, %v1046
      %v1079 = vadd.f32 %v979, %v1047
      %v1080 = vadd.f32 %v980, %v1048
      %v1081 = vadd.f32 %v981, %v1049
      %v1082 = vadd.f32 %v982, %v1050
      %v1083 = vadd.f32 %v983, %v1051
      %v1084 = vadd.f32 %v984, %v1052
      %v1085 = vadd.f32 %v985, %v1053
      %v1086 = vadd.f32 %v986, %v1054
      %v1087 = vadd.f32 %v987, %v1055
      %v1088 = vadd.f32 %v988, %v1056
      %v1089 = vadd.f32 %v989, %v1057
      %v1090 = vadd.f32 %v990, %v1058
      %v1091 = vadd.f32 %v991, %v1059
      %v1092 = vadd.f32 %v992, %v1060
      %v1093 = vadd.f32 %v993, %v1061
      %v1094 = vadd.f32 %v994, %v1062
      %v1095 = vadd.f32 %v995, %v1063
      %v1096 = vadd.f32 %v996, %v1064
      %v1097 = vadd.f32 %v997, %v1065
      %v1098 = vadd.f32 %v998, %v1066
      %v1099 = vadd.f32 %v999, %v1067
      %v1100 = vadd.f32 %v1000, %v1068
      %v1101 = vadd.f32 %v1001, %v1069
      %v1102 = vadd.f32 %v1002, %v1070
      %v1103 = vadd.f32 %v1003, %v1071
      %v1104 = vadd.f32 %v1004, %v1072
      %v1105 = vadd.f32 %v1005, %v1073
      %v1106 = vadd.f32 %v1006, %v1074
      %v1107 = vadd.f32 %v1007, %v1075
      %v1108 = vadd.f32 %v1008, %v1076
      %v1109 = vld [vmem:[%s316 + $0x7] sm:$0xff]
      %v1110 = vld [vmem:[%s316 + $0xf] sm:$0xff]
      %v1111 = vld [vmem:[%s316 + $0x27] sm:$0xff]
      %v1112 = vld [vmem:[%s316 + $0x2f] sm:$0xff]
      %v1113 = vld [vmem:[%s316 + $0x47] sm:$0xff]
      %v1114 = vld [vmem:[%s316 + $0x4f] sm:$0xff]
      %v1115 = vld [vmem:[%s316 + $0x67] sm:$0xff]
      %v1116 = vld [vmem:[%s316 + $0x6f] sm:$0xff]
      %v1117 = vld [vmem:[%s316 + $0x87] sm:$0xff]
      %v1118 = vld [vmem:[%s316 + $0x8f] sm:$0xff]
      %v1119 = vld [vmem:[%s316 + $0xa7] sm:$0xff]
      %v1120 = vld [vmem:[%s316 + $0xaf] sm:$0xff]
      %v1121 = vld [vmem:[%s316 + $0xc7] sm:$0xff]
      %v1122 = vld [vmem:[%s316 + $0xcf] sm:$0xff]
      %v1123 = vld [vmem:[%s316 + $0xe7] sm:$0xff]
      %v1124 = vld [vmem:[%s316 + $0xef] sm:$0xff]
      %v1125 = vld [vmem:[%s316 + $0x107] sm:$0xff]
      %v1126 = vld [vmem:[%s316 + $0x10f] sm:$0xff]
      %v1127 = vld [vmem:[%s316 + $0x127] sm:$0xff]
      %v1128 = vld [vmem:[%s316 + $0x12f] sm:$0xff]
      %v1129 = vld [vmem:[%s316 + $0x147] sm:$0xff]
      %v1130 = vld [vmem:[%s316 + $0x14f] sm:$0xff]
      %v1131 = vld [vmem:[%s316 + $0x167] sm:$0xff]
      %v1132 = vld [vmem:[%s316 + $0x16f] sm:$0xff]
      %v1133 = vld [vmem:[%s316 + $0x187] sm:$0xff]
      %v1134 = vld [vmem:[%s316 + $0x18f] sm:$0xff]
      %v1135 = vld [vmem:[%s316 + $0x1a7] sm:$0xff]
      %v1136 = vld [vmem:[%s316 + $0x1af] sm:$0xff]
      %v1137 = vld [vmem:[%s316 + $0x1c7] sm:$0xff]
      %v1138 = vld [vmem:[%s316 + $0x1cf] sm:$0xff]
      %v1139 = vld [vmem:[%s316 + $0x1e7] sm:$0xff]
      %v1140 = vld [vmem:[%s316 + $0x1ef] sm:$0xff]
      %v1141 = vlaneseq
      %v1142 = vshrl.u32 %v1141, 7
      %v1143 = vsub.s32 3, %v1142
      %v1144 = vrot.slane %v807, %v1143
      %v1145 = vmul.f32 %v1109, %v1144
      %v1146 = vmul.f32 %v1110, %v1144
      %v1147 = vmul.f32 %v1111, %v1144
      %v1148 = vmul.f32 %v1112, %v1144
      %v1149 = vmul.f32 %v1113, %v1144
      %v1150 = vmul.f32 %v1114, %v1144
      %v1151 = vmul.f32 %v1115, %v1144
      %v1152 = vmul.f32 %v1116, %v1144
      %v1153 = vmul.f32 %v1117, %v1144
      %v1154 = vmul.f32 %v1118, %v1144
      %v1155 = vmul.f32 %v1119, %v1144
      %v1156 = vmul.f32 %v1120, %v1144
      %v1157 = vmul.f32 %v1121, %v1144
      %v1158 = vmul.f32 %v1122, %v1144
      %v1159 = vmul.f32 %v1123, %v1144
      %v1160 = vmul.f32 %v1124, %v1144
      %v1161 = vmul.f32 %v1125, %v1144
      %v1162 = vmul.f32 %v1126, %v1144
      %v1163 = vmul.f32 %v1127, %v1144
      %v1164 = vmul.f32 %v1128, %v1144
      %v1165 = vmul.f32 %v1129, %v1144
      %v1166 = vmul.f32 %v1130, %v1144
      %v1167 = vmul.f32 %v1131, %v1144
      %v1168 = vmul.f32 %v1132, %v1144
      %v1169 = vmul.f32 %v1133, %v1144
      %v1170 = vmul.f32 %v1134, %v1144
      %v1171 = vmul.f32 %v1135, %v1144
      %v1172 = vmul.f32 %v1136, %v1144
      %v1173 = vmul.f32 %v1137, %v1144
      %v1174 = vmul.f32 %v1138, %v1144
      %v1175 = vmul.f32 %v1139, %v1144
      %v1176 = vmul.f32 %v1140, %v1144
      %v1177 = vadd.f32 %v1077, %v1145
      %v1178 = vadd.f32 %v1078, %v1146
      %v1179 = vadd.f32 %v1079, %v1147
      %v1180 = vadd.f32 %v1080, %v1148
      %v1181 = vadd.f32 %v1081, %v1149
      %v1182 = vadd.f32 %v1082, %v1150
      %v1183 = vadd.f32 %v1083, %v1151
      %v1184 = vadd.f32 %v1084, %v1152
      %v1185 = vadd.f32 %v1085, %v1153
      %v1186 = vadd.f32 %v1086, %v1154
      %v1187 = vadd.f32 %v1087, %v1155
      %v1188 = vadd.f32 %v1088, %v1156
      %v1189 = vadd.f32 %v1089, %v1157
      %v1190 = vadd.f32 %v1090, %v1158
      %v1191 = vadd.f32 %v1091, %v1159
      %v1192 = vadd.f32 %v1092, %v1160
      %v1193 = vadd.f32 %v1093, %v1161
      %v1194 = vadd.f32 %v1094, %v1162
      %v1195 = vadd.f32 %v1095, %v1163
      %v1196 = vadd.f32 %v1096, %v1164
      %v1197 = vadd.f32 %v1097, %v1165
      %v1198 = vadd.f32 %v1098, %v1166
      %v1199 = vadd.f32 %v1099, %v1167
      %v1200 = vadd.f32 %v1100, %v1168
      %v1201 = vadd.f32 %v1101, %v1169
      %v1202 = vadd.f32 %v1102, %v1170
      %v1203 = vadd.f32 %v1103, %v1171
      %v1204 = vadd.f32 %v1104, %v1172
      %v1205 = vadd.f32 %v1105, %v1173
      %v1206 = vadd.f32 %v1106, %v1174
      %v1207 = vadd.f32 %v1107, %v1175
      %v1208 = vadd.f32 %v1108, %v1176
      %v1209 = vld [vmem:[%s316 + $0x8] sm:$0xff]
      %v1210 = vld [vmem:[%s316 + $0x10] sm:$0xff]
      %v1211 = vld [vmem:[%s316 + $0x28] sm:$0xff]
      %v1212 = vld [vmem:[%s316 + $0x30] sm:$0xff]
      %v1213 = vld [vmem:[%s316 + $0x48] sm:$0xff]
      %v1214 = vld [vmem:[%s316 + $0x50] sm:$0xff]
      %v1215 = vld [vmem:[%s316 + $0x68] sm:$0xff]
      %v1216 = vld [vmem:[%s316 + $0x70] sm:$0xff]
      %v1217 = vld [vmem:[%s316 + $0x88] sm:$0xff]
      %v1218 = vld [vmem:[%s316 + $0x90] sm:$0xff]
      %v1219 = vld [vmem:[%s316 + $0xa8] sm:$0xff]
      %v1220 = vld [vmem:[%s316 + $0xb0] sm:$0xff]
      %v1221 = vld [vmem:[%s316 + $0xc8] sm:$0xff]
      %v1222 = vld [vmem:[%s316 + $0xd0] sm:$0xff]
      %v1223 = vld [vmem:[%s316 + $0xe8] sm:$0xff]
      %v1224 = vld [vmem:[%s316 + $0xf0] sm:$0xff]
      %v1225 = vld [vmem:[%s316 + $0x108] sm:$0xff]
      %v1226 = vld [vmem:[%s316 + $0x110] sm:$0xff]
      %v1227 = vld [vmem:[%s316 + $0x128] sm:$0xff]
      %v1228 = vld [vmem:[%s316 + $0x130] sm:$0xff]
      %v1229 = vld [vmem:[%s316 + $0x148] sm:$0xff]
      %v1230 = vld [vmem:[%s316 + $0x150] sm:$0xff]
      %v1231 = vld [vmem:[%s316 + $0x168] sm:$0xff]
      %v1232 = vld [vmem:[%s316 + $0x170] sm:$0xff]
      %v1233 = vld [vmem:[%s316 + $0x188] sm:$0xff]
      %v1234 = vld [vmem:[%s316 + $0x190] sm:$0xff]
      %v1235 = vld [vmem:[%s316 + $0x1a8] sm:$0xff]
      %v1236 = vld [vmem:[%s316 + $0x1b0] sm:$0xff]
      %v1237 = vld [vmem:[%s316 + $0x1c8] sm:$0xff]
      %v1238 = vld [vmem:[%s316 + $0x1d0] sm:$0xff]
      %v1239 = vld [vmem:[%s316 + $0x1e8] sm:$0xff]
      %v1240 = vld [vmem:[%s316 + $0x1f0] sm:$0xff]
      %v1241 = vlaneseq
      %v1242 = vshrl.u32 %v1241, 7
      %v1243 = vsub.s32 4, %v1242
      %v1244 = vrot.slane %v807, %v1243
      %v1245 = vmul.f32 %v1209, %v1244
      %v1246 = vmul.f32 %v1210, %v1244
      %v1247 = vmul.f32 %v1211, %v1244
      %v1248 = vmul.f32 %v1212, %v1244
      %v1249 = vmul.f32 %v1213, %v1244
      %v1250 = vmul.f32 %v1214, %v1244
      %v1251 = vmul.f32 %v1215, %v1244
      %v1252 = vmul.f32 %v1216, %v1244
      %v1253 = vmul.f32 %v1217, %v1244
      %v1254 = vmul.f32 %v1218, %v1244
      %v1255 = vmul.f32 %v1219, %v1244
      %v1256 = vmul.f32 %v1220, %v1244
      %v1257 = vmul.f32 %v1221, %v1244
      %v1258 = vmul.f32 %v1222, %v1244
      %v1259 = vmul.f32 %v1223, %v1244
      %v1260 = vmul.f32 %v1224, %v1244
      %v1261 = vmul.f32 %v1225, %v1244
      %v1262 = vmul.f32 %v1226, %v1244
      %v1263 = vmul.f32 %v1227, %v1244
      %v1264 = vmul.f32 %v1228, %v1244
      %v1265 = vmul.f32 %v1229, %v1244
      %v1266 = vmul.f32 %v1230, %v1244
      %v1267 = vmul.f32 %v1231, %v1244
      %v1268 = vmul.f32 %v1232, %v1244
      %v1269 = vmul.f32 %v1233, %v1244
      %v1270 = vmul.f32 %v1234, %v1244
      %v1271 = vmul.f32 %v1235, %v1244
      %v1272 = vmul.f32 %v1236, %v1244
      %v1273 = vmul.f32 %v1237, %v1244
      %v1274 = vmul.f32 %v1238, %v1244
      %v1275 = vmul.f32 %v1239, %v1244
      %v1276 = vmul.f32 %v1240, %v1244
      %v1277 = vadd.f32 %v1177, %v1245
      %v1278 = vadd.f32 %v1178, %v1246
      %v1279 = vadd.f32 %v1179, %v1247
      %v1280 = vadd.f32 %v1180, %v1248
      %v1281 = vadd.f32 %v1181, %v1249
      %v1282 = vadd.f32 %v1182, %v1250
      %v1283 = vadd.f32 %v1183, %v1251
      %v1284 = vadd.f32 %v1184, %v1252
      %v1285 = vadd.f32 %v1185, %v1253
      %v1286 = vadd.f32 %v1186, %v1254
      %v1287 = vadd.f32 %v1187, %v1255
      %v1288 = vadd.f32 %v1188, %v1256
      %v1289 = vadd.f32 %v1189, %v1257
      %v1290 = vadd.f32 %v1190, %v1258
      %v1291 = vadd.f32 %v1191, %v1259
      %v1292 = vadd.f32 %v1192, %v1260
      %v1293 = vadd.f32 %v1193, %v1261
      %v1294 = vadd.f32 %v1194, %v1262
      %v1295 = vadd.f32 %v1195, %v1263
      %v1296 = vadd.f32 %v1196, %v1264
      %v1297 = vadd.f32 %v1197, %v1265
      %v1298 = vadd.f32 %v1198, %v1266
      %v1299 = vadd.f32 %v1199, %v1267
      %v1300 = vadd.f32 %v1200, %v1268
      %v1301 = vadd.f32 %v1201, %v1269
      %v1302 = vadd.f32 %v1202, %v1270
      %v1303 = vadd.f32 %v1203, %v1271
      %v1304 = vadd.f32 %v1204, %v1272
      %v1305 = vadd.f32 %v1205, %v1273
      %v1306 = vadd.f32 %v1206, %v1274
      %v1307 = vadd.f32 %v1207, %v1275
      %v1308 = vadd.f32 %v1208, %v1276
      %v1309 = vld [vmem:[%s316 + $0x9] sm:$0xff]
      %v1310 = vld [vmem:[%s316 + $0x11] sm:$0xff]
      %v1311 = vld [vmem:[%s316 + $0x29] sm:$0xff]
      %v1312 = vld [vmem:[%s316 + $0x31] sm:$0xff]
      %v1313 = vld [vmem:[%s316 + $0x49] sm:$0xff]
      %v1314 = vld [vmem:[%s316 + $0x51] sm:$0xff]
      %v1315 = vld [vmem:[%s316 + $0x69] sm:$0xff]
      %v1316 = vld [vmem:[%s316 + $0x71] sm:$0xff]
      %v1317 = vld [vmem:[%s316 + $0x89] sm:$0xff]
      %v1318 = vld [vmem:[%s316 + $0x91] sm:$0xff]
      %v1319 = vld [vmem:[%s316 + $0xa9] sm:$0xff]
      %v1320 = vld [vmem:[%s316 + $0xb1] sm:$0xff]
      %v1321 = vld [vmem:[%s316 + $0xc9] sm:$0xff]
      %v1322 = vld [vmem:[%s316 + $0xd1] sm:$0xff]
      %v1323 = vld [vmem:[%s316 + $0xe9] sm:$0xff]
      %v1324 = vld [vmem:[%s316 + $0xf1] sm:$0xff]
      %v1325 = vld [vmem:[%s316 + $0x109] sm:$0xff]
      %v1326 = vld [vmem:[%s316 + $0x111] sm:$0xff]
      %v1327 = vld [vmem:[%s316 + $0x129] sm:$0xff]
      %v1328 = vld [vmem:[%s316 + $0x131] sm:$0xff]
      %v1329 = vld [vmem:[%s316 + $0x149] sm:$0xff]
      %v1330 = vld [vmem:[%s316 + $0x151] sm:$0xff]
      %v1331 = vld [vmem:[%s316 + $0x169] sm:$0xff]
      %v1332 = vld [vmem:[%s316 + $0x171] sm:$0xff]
      %v1333 = vld [vmem:[%s316 + $0x189] sm:$0xff]
      %v1334 = vld [vmem:[%s316 + $0x191] sm:$0xff]
      %v1335 = vld [vmem:[%s316 + $0x1a9] sm:$0xff]
      %v1336 = vld [vmem:[%s316 + $0x1b1] sm:$0xff]
      %v1337 = vld [vmem:[%s316 + $0x1c9] sm:$0xff]
      %v1338 = vld [vmem:[%s316 + $0x1d1] sm:$0xff]
      %v1339 = vld [vmem:[%s316 + $0x1e9] sm:$0xff]
      %v1340 = vld [vmem:[%s316 + $0x1f1] sm:$0xff]
      %v1341 = vlaneseq
      %v1342 = vshrl.u32 %v1341, 7
      %v1343 = vsub.s32 5, %v1342
      %v1344 = vrot.slane %v807, %v1343
      %v1345 = vmul.f32 %v1309, %v1344
      %v1346 = vmul.f32 %v1310, %v1344
      %v1347 = vmul.f32 %v1311, %v1344
      %v1348 = vmul.f32 %v1312, %v1344
      %v1349 = vmul.f32 %v1313, %v1344
      %v1350 = vmul.f32 %v1314, %v1344
      %v1351 = vmul.f32 %v1315, %v1344
      %v1352 = vmul.f32 %v1316, %v1344
      %v1353 = vmul.f32 %v1317, %v1344
      %v1354 = vmul.f32 %v1318, %v1344
      %v1355 = vmul.f32 %v1319, %v1344
      %v1356 = vmul.f32 %v1320, %v1344
      %v1357 = vmul.f32 %v1321, %v1344
      %v1358 = vmul.f32 %v1322, %v1344
      %v1359 = vmul.f32 %v1323, %v1344
      %v1360 = vmul.f32 %v1324, %v1344
      %v1361 = vmul.f32 %v1325, %v1344
      %v1362 = vmul.f32 %v1326, %v1344
      %v1363 = vmul.f32 %v1327, %v1344
      %v1364 = vmul.f32 %v1328, %v1344
      %v1365 = vmul.f32 %v1329, %v1344
      %v1366 = vmul.f32 %v1330, %v1344
      %v1367 = vmul.f32 %v1331, %v1344
      %v1368 = vmul.f32 %v1332, %v1344
      %v1369 = vmul.f32 %v1333, %v1344
      %v1370 = vmul.f32 %v1334, %v1344
      %v1371 = vmul.f32 %v1335, %v1344
      %v1372 = vmul.f32 %v1336, %v1344
      %v1373 = vmul.f32 %v1337, %v1344
      %v1374 = vmul.f32 %v1338, %v1344
      %v1375 = vmul.f32 %v1339, %v1344
      %v1376 = vmul.f32 %v1340, %v1344
      %v1377 = vadd.f32 %v1277, %v1345
      %v1378 = vadd.f32 %v1278, %v1346
      %v1379 = vadd.f32 %v1279, %v1347
      %v1380 = vadd.f32 %v1280, %v1348
      %v1381 = vadd.f32 %v1281, %v1349
      %v1382 = vadd.f32 %v1282, %v1350
      %v1383 = vadd.f32 %v1283, %v1351
      %v1384 = vadd.f32 %v1284, %v1352
      %v1385 = vadd.f32 %v1285, %v1353
      %v1386 = vadd.f32 %v1286, %v1354
      %v1387 = vadd.f32 %v1287, %v1355
      %v1388 = vadd.f32 %v1288, %v1356
      %v1389 = vadd.f32 %v1289, %v1357
      %v1390 = vadd.f32 %v1290, %v1358
      %v1391 = vadd.f32 %v1291, %v1359
      %v1392 = vadd.f32 %v1292, %v1360
      %v1393 = vadd.f32 %v1293, %v1361
      %v1394 = vadd.f32 %v1294, %v1362
      %v1395 = vadd.f32 %v1295, %v1363
      %v1396 = vadd.f32 %v1296, %v1364
      %v1397 = vadd.f32 %v1297, %v1365
      %v1398 = vadd.f32 %v1298, %v1366
      %v1399 = vadd.f32 %v1299, %v1367
      %v1400 = vadd.f32 %v1300, %v1368
      %v1401 = vadd.f32 %v1301, %v1369
      %v1402 = vadd.f32 %v1302, %v1370
      %v1403 = vadd.f32 %v1303, %v1371
      %v1404 = vadd.f32 %v1304, %v1372
      %v1405 = vadd.f32 %v1305, %v1373
      %v1406 = vadd.f32 %v1306, %v1374
      %v1407 = vadd.f32 %v1307, %v1375
      %v1408 = vadd.f32 %v1308, %v1376
      %s1409 = scalar_lea.vmem [#allocation2], 64
      %v1410 = vld [vmem:[%s1409 + $0x7] sm:$0xff]
      %v1411 = vld [vmem:[%s1409 + $0xf] sm:$0xff]
      %v1412 = vld [vmem:[%s1409 + $0x27] sm:$0xff]
      %v1413 = vld [vmem:[%s1409 + $0x2f] sm:$0xff]
      %v1414 = vld [vmem:[%s1409 + $0x47] sm:$0xff]
      %v1415 = vld [vmem:[%s1409 + $0x4f] sm:$0xff]
      %v1416 = vld [vmem:[%s1409 + $0x67] sm:$0xff]
      %v1417 = vld [vmem:[%s1409 + $0x6f] sm:$0xff]
      %v1418 = vld [vmem:[%s1409 + $0x87] sm:$0xff]
      %v1419 = vld [vmem:[%s1409 + $0x8f] sm:$0xff]
      %v1420 = vld [vmem:[%s1409 + $0xa7] sm:$0xff]
      %v1421 = vld [vmem:[%s1409 + $0xaf] sm:$0xff]
      %v1422 = vld [vmem:[%s1409 + $0xc7] sm:$0xff]
      %v1423 = vld [vmem:[%s1409 + $0xcf] sm:$0xff]
      %v1424 = vld [vmem:[%s1409 + $0xe7] sm:$0xff]
      %v1425 = vld [vmem:[%s1409 + $0xef] sm:$0xff]
      %v1426 = vld [vmem:[%s1409 + $0x107] sm:$0xff]
      %v1427 = vld [vmem:[%s1409 + $0x10f] sm:$0xff]
      %v1428 = vld [vmem:[%s1409 + $0x127] sm:$0xff]
      %v1429 = vld [vmem:[%s1409 + $0x12f] sm:$0xff]
      %v1430 = vld [vmem:[%s1409 + $0x147] sm:$0xff]
      %v1431 = vld [vmem:[%s1409 + $0x14f] sm:$0xff]
      %v1432 = vld [vmem:[%s1409 + $0x167] sm:$0xff]
      %v1433 = vld [vmem:[%s1409 + $0x16f] sm:$0xff]
      %v1434 = vld [vmem:[%s1409 + $0x187] sm:$0xff]
      %v1435 = vld [vmem:[%s1409 + $0x18f] sm:$0xff]
      %v1436 = vld [vmem:[%s1409 + $0x1a7] sm:$0xff]
      %v1437 = vld [vmem:[%s1409 + $0x1af] sm:$0xff]
      %v1438 = vld [vmem:[%s1409 + $0x1c7] sm:$0xff]
      %v1439 = vld [vmem:[%s1409 + $0x1cf] sm:$0xff]
      %v1440 = vld [vmem:[%s1409 + $0x1e7] sm:$0xff]
      %v1441 = vld [vmem:[%s1409 + $0x1ef] sm:$0xff]
      %v1442 = vlaneseq
      %v1443 = vshrl.u32 %v1442, 7
      %v1444 = vsub.s32 6, %v1443
      %v1445 = vrot.slane %v807, %v1444
      %v1446 = vmul.f32 %v1410, %v1445
      %v1447 = vmul.f32 %v1411, %v1445
      %v1448 = vmul.f32 %v1412, %v1445
      %v1449 = vmul.f32 %v1413, %v1445
      %v1450 = vmul.f32 %v1414, %v1445
      %v1451 = vmul.f32 %v1415, %v1445
      %v1452 = vmul.f32 %v1416, %v1445
      %v1453 = vmul.f32 %v1417, %v1445
      %v1454 = vmul.f32 %v1418, %v1445
      %v1455 = vmul.f32 %v1419, %v1445
      %v1456 = vmul.f32 %v1420, %v1445
      %v1457 = vmul.f32 %v1421, %v1445
      %v1458 = vmul.f32 %v1422, %v1445
      %v1459 = vmul.f32 %v1423, %v1445
      %v1460 = vmul.f32 %v1424, %v1445
      %v1461 = vmul.f32 %v1425, %v1445
      %v1462 = vmul.f32 %v1426, %v1445
      %v1463 = vmul.f32 %v1427, %v1445
      %v1464 = vmul.f32 %v1428, %v1445
      %v1465 = vmul.f32 %v1429, %v1445
      %v1466 = vmul.f32 %v1430, %v1445
      %v1467 = vmul.f32 %v1431, %v1445
      %v1468 = vmul.f32 %v1432, %v1445
      %v1469 = vmul.f32 %v1433, %v1445
      %v1470 = vmul.f32 %v1434, %v1445
      %v1471 = vmul.f32 %v1435, %v1445
      %v1472 = vmul.f32 %v1436, %v1445
      %v1473 = vmul.f32 %v1437, %v1445
      %v1474 = vmul.f32 %v1438, %v1445
      %v1475 = vmul.f32 %v1439, %v1445
      %v1476 = vmul.f32 %v1440, %v1445
      %v1477 = vmul.f32 %v1441, %v1445
      %v1478 = vadd.f32 %v1377, %v1446
      %v1479 = vadd.f32 %v1378, %v1447
      %v1480 = vadd.f32 %v1379, %v1448
      %v1481 = vadd.f32 %v1380, %v1449
      %v1482 = vadd.f32 %v1381, %v1450
      %v1483 = vadd.f32 %v1382, %v1451
      %v1484 = vadd.f32 %v1383, %v1452
      %v1485 = vadd.f32 %v1384, %v1453
      %v1486 = vadd.f32 %v1385, %v1454
      %v1487 = vadd.f32 %v1386, %v1455
      %v1488 = vadd.f32 %v1387, %v1456
      %v1489 = vadd.f32 %v1388, %v1457
      %v1490 = vadd.f32 %v1389, %v1458
      %v1491 = vadd.f32 %v1390, %v1459
      %v1492 = vadd.f32 %v1391, %v1460
      %v1493 = vadd.f32 %v1392, %v1461
      %v1494 = vadd.f32 %v1393, %v1462
      %v1495 = vadd.f32 %v1394, %v1463
      %v1496 = vadd.f32 %v1395, %v1464
      %v1497 = vadd.f32 %v1396, %v1465
      %v1498 = vadd.f32 %v1397, %v1466
      %v1499 = vadd.f32 %v1398, %v1467
      %v1500 = vadd.f32 %v1399, %v1468
      %v1501 = vadd.f32 %v1400, %v1469
      %v1502 = vadd.f32 %v1401, %v1470
      %v1503 = vadd.f32 %v1402, %v1471
      %v1504 = vadd.f32 %v1403, %v1472
      %v1505 = vadd.f32 %v1404, %v1473
      %v1506 = vadd.f32 %v1405, %v1474
      %v1507 = vadd.f32 %v1406, %v1475
      %v1508 = vadd.f32 %v1407, %v1476
      %v1509 = vadd.f32 %v1408, %v1477
      %v1510 = vld [vmem:[%s1409 + $0x8] sm:$0xff]
      %v1511 = vld [vmem:[%s1409 + $0x10] sm:$0xff]
      %v1512 = vld [vmem:[%s1409 + $0x28] sm:$0xff]
      %v1513 = vld [vmem:[%s1409 + $0x30] sm:$0xff]
      %v1514 = vld [vmem:[%s1409 + $0x48] sm:$0xff]
      %v1515 = vld [vmem:[%s1409 + $0x50] sm:$0xff]
      %v1516 = vld [vmem:[%s1409 + $0x68] sm:$0xff]
      %v1517 = vld [vmem:[%s1409 + $0x70] sm:$0xff]
      %v1518 = vld [vmem:[%s1409 + $0x88] sm:$0xff]
      %v1519 = vld [vmem:[%s1409 + $0x90] sm:$0xff]
      %v1520 = vld [vmem:[%s1409 + $0xa8] sm:$0xff]
      %v1521 = vld [vmem:[%s1409 + $0xb0] sm:$0xff]
      %v1522 = vld [vmem:[%s1409 + $0xc8] sm:$0xff]
      %v1523 = vld [vmem:[%s1409 + $0xd0] sm:$0xff]
      %v1524 = vld [vmem:[%s1409 + $0xe8] sm:$0xff]
      %v1525 = vld [vmem:[%s1409 + $0xf0] sm:$0xff]
      %v1526 = vld [vmem:[%s1409 + $0x108] sm:$0xff]
      %v1527 = vld [vmem:[%s1409 + $0x110] sm:$0xff]
      %v1528 = vld [vmem:[%s1409 + $0x128] sm:$0xff]
      %v1529 = vld [vmem:[%s1409 + $0x130] sm:$0xff]
      %v1530 = vld [vmem:[%s1409 + $0x148] sm:$0xff]
      %v1531 = vld [vmem:[%s1409 + $0x150] sm:$0xff]
      %v1532 = vld [vmem:[%s1409 + $0x168] sm:$0xff]
      %v1533 = vld [vmem:[%s1409 + $0x170] sm:$0xff]
      %v1534 = vld [vmem:[%s1409 + $0x188] sm:$0xff]
      %v1535 = vld [vmem:[%s1409 + $0x190] sm:$0xff]
      %v1536 = vld [vmem:[%s1409 + $0x1a8] sm:$0xff]
      %v1537 = vld [vmem:[%s1409 + $0x1b0] sm:$0xff]
      %v1538 = vld [vmem:[%s1409 + $0x1c8] sm:$0xff]
      %v1539 = vld [vmem:[%s1409 + $0x1d0] sm:$0xff]
      %v1540 = vld [vmem:[%s1409 + $0x1e8] sm:$0xff]
      %v1541 = vld [vmem:[%s1409 + $0x1f0] sm:$0xff]
      %v1542 = vlaneseq
      %v1543 = vshrl.u32 %v1542, 7
      %v1544 = vsub.s32 7, %v1543
      %v1545 = vrot.slane %v807, %v1544
      %v1546 = vmul.f32 %v1510, %v1545
      %v1547 = vmul.f32 %v1511, %v1545
      %v1548 = vmul.f32 %v1512, %v1545
      %v1549 = vmul.f32 %v1513, %v1545
      %v1550 = vmul.f32 %v1514, %v1545
      %v1551 = vmul.f32 %v1515, %v1545
      %v1552 = vmul.f32 %v1516, %v1545
      %v1553 = vmul.f32 %v1517, %v1545
      %v1554 = vmul.f32 %v1518, %v1545
      %v1555 = vmul.f32 %v1519, %v1545
      %v1556 = vmul.f32 %v1520, %v1545
      %v1557 = vmul.f32 %v1521, %v1545
      %v1558 = vmul.f32 %v1522, %v1545
      %v1559 = vmul.f32 %v1523, %v1545
      %v1560 = vmul.f32 %v1524, %v1545
      %v1561 = vmul.f32 %v1525, %v1545
      %v1562 = vmul.f32 %v1526, %v1545
      %v1563 = vmul.f32 %v1527, %v1545
      %v1564 = vmul.f32 %v1528, %v1545
      %v1565 = vmul.f32 %v1529, %v1545
      %v1566 = vmul.f32 %v1530, %v1545
      %v1567 = vmul.f32 %v1531, %v1545
      %v1568 = vmul.f32 %v1532, %v1545
      %v1569 = vmul.f32 %v1533, %v1545
      %v1570 = vmul.f32 %v1534, %v1545
      %v1571 = vmul.f32 %v1535, %v1545
      %v1572 = vmul.f32 %v1536, %v1545
      %v1573 = vmul.f32 %v1537, %v1545
      %v1574 = vmul.f32 %v1538, %v1545
      %v1575 = vmul.f32 %v1539, %v1545
      %v1576 = vmul.f32 %v1540, %v1545
      %v1577 = vmul.f32 %v1541, %v1545
      %v1578 = vadd.f32 %v1478, %v1546
      %v1579 = vadd.f32 %v1479, %v1547
      %v1580 = vadd.f32 %v1480, %v1548
      %v1581 = vadd.f32 %v1481, %v1549
      %v1582 = vadd.f32 %v1482, %v1550
      %v1583 = vadd.f32 %v1483, %v1551
      %v1584 = vadd.f32 %v1484, %v1552
      %v1585 = vadd.f32 %v1485, %v1553
      %v1586 = vadd.f32 %v1486, %v1554
      %v1587 = vadd.f32 %v1487, %v1555
      %v1588 = vadd.f32 %v1488, %v1556
      %v1589 = vadd.f32 %v1489, %v1557
      %v1590 = vadd.f32 %v1490, %v1558
      %v1591 = vadd.f32 %v1491, %v1559
      %v1592 = vadd.f32 %v1492, %v1560
      %v1593 = vadd.f32 %v1493, %v1561
      %v1594 = vadd.f32 %v1494, %v1562
      %v1595 = vadd.f32 %v1495, %v1563
      %v1596 = vadd.f32 %v1496, %v1564
      %v1597 = vadd.f32 %v1497, %v1565
      %v1598 = vadd.f32 %v1498, %v1566
      %v1599 = vadd.f32 %v1499, %v1567
      %v1600 = vadd.f32 %v1500, %v1568
      %v1601 = vadd.f32 %v1501, %v1569
      %v1602 = vadd.f32 %v1502, %v1570
      %v1603 = vadd.f32 %v1503, %v1571
      %v1604 = vadd.f32 %v1504, %v1572
      %v1605 = vadd.f32 %v1505, %v1573
      %v1606 = vadd.f32 %v1506, %v1574
      %v1607 = vadd.f32 %v1507, %v1575
      %v1608 = vadd.f32 %v1508, %v1576
      %v1609 = vadd.f32 %v1509, %v1577
      %v1610 = vld [vmem:[%s1409 + $0x9] sm:$0xff]
      %v1611 = vld [vmem:[%s1409 + $0x11] sm:$0xff]
      %v1612 = vld [vmem:[%s1409 + $0x29] sm:$0xff]
      %v1613 = vld [vmem:[%s1409 + $0x31] sm:$0xff]
      %v1614 = vld [vmem:[%s1409 + $0x49] sm:$0xff]
      %v1615 = vld [vmem:[%s1409 + $0x51] sm:$0xff]
      %v1616 = vld [vmem:[%s1409 + $0x69] sm:$0xff]
      %v1617 = vld [vmem:[%s1409 + $0x71] sm:$0xff]
      %v1618 = vld [vmem:[%s1409 + $0x89] sm:$0xff]
      %v1619 = vld [vmem:[%s1409 + $0x91] sm:$0xff]
      %v1620 = vld [vmem:[%s1409 + $0xa9] sm:$0xff]
      %v1621 = vld [vmem:[%s1409 + $0xb1] sm:$0xff]
      %v1622 = vld [vmem:[%s1409 + $0xc9] sm:$0xff]
      %v1623 = vld [vmem:[%s1409 + $0xd1] sm:$0xff]
      %v1624 = vld [vmem:[%s1409 + $0xe9] sm:$0xff]
      %v1625 = vld [vmem:[%s1409 + $0xf1] sm:$0xff]
      %v1626 = vld [vmem:[%s1409 + $0x109] sm:$0xff]
      %v1627 = vld [vmem:[%s1409 + $0x111] sm:$0xff]
      %v1628 = vld [vmem:[%s1409 + $0x129] sm:$0xff]
      %v1629 = vld [vmem:[%s1409 + $0x131] sm:$0xff]
      %v1630 = vld [vmem:[%s1409 + $0x149] sm:$0xff]
      %v1631 = vld [vmem:[%s1409 + $0x151] sm:$0xff]
      %v1632 = vld [vmem:[%s1409 + $0x169] sm:$0xff]
      %v1633 = vld [vmem:[%s1409 + $0x171] sm:$0xff]
      %v1634 = vld [vmem:[%s1409 + $0x189] sm:$0xff]
      %v1635 = vld [vmem:[%s1409 + $0x191] sm:$0xff]
      %v1636 = vld [vmem:[%s1409 + $0x1a9] sm:$0xff]
      %v1637 = vld [vmem:[%s1409 + $0x1b1] sm:$0xff]
      %v1638 = vld [vmem:[%s1409 + $0x1c9] sm:$0xff]
      %v1639 = vld [vmem:[%s1409 + $0x1d1] sm:$0xff]
      %v1640 = vld [vmem:[%s1409 + $0x1e9] sm:$0xff]
      %v1641 = vld [vmem:[%s1409 + $0x1f1] sm:$0xff]
      %v1642 = vlaneseq
      %v1643 = vshrl.u32 %v1642, 7
      %v1644 = vsub.s32 0, %v1643
      %v1645 = vrot.slane %v808, %v1644
      %v1646 = vmul.f32 %v1610, %v1645
      %v1647 = vmul.f32 %v1611, %v1645
      %v1648 = vmul.f32 %v1612, %v1645
      %v1649 = vmul.f32 %v1613, %v1645
      %v1650 = vmul.f32 %v1614, %v1645
      %v1651 = vmul.f32 %v1615, %v1645
      %v1652 = vmul.f32 %v1616, %v1645
      %v1653 = vmul.f32 %v1617, %v1645
      %v1654 = vmul.f32 %v1618, %v1645
      %v1655 = vmul.f32 %v1619, %v1645
      %v1656 = vmul.f32 %v1620, %v1645
      %v1657 = vmul.f32 %v1621, %v1645
      %v1658 = vmul.f32 %v1622, %v1645
      %v1659 = vmul.f32 %v1623, %v1645
      %v1660 = vmul.f32 %v1624, %v1645
      %v1661 = vmul.f32 %v1625, %v1645
      %v1662 = vmul.f32 %v1626, %v1645
      %v1663 = vmul.f32 %v1627, %v1645
      %v1664 = vmul.f32 %v1628, %v1645
      %v1665 = vmul.f32 %v1629, %v1645
      %v1666 = vmul.f32 %v1630, %v1645
      %v1667 = vmul.f32 %v1631, %v1645
      %v1668 = vmul.f32 %v1632, %v1645
      %v1669 = vmul.f32 %v1633, %v1645
      %v1670 = vmul.f32 %v1634, %v1645
      %v1671 = vmul.f32 %v1635, %v1645
      %v1672 = vmul.f32 %v1636, %v1645
      %v1673 = vmul.f32 %v1637, %v1645
      %v1674 = vmul.f32 %v1638, %v1645
      %v1675 = vmul.f32 %v1639, %v1645
      %v1676 = vmul.f32 %v1640, %v1645
      %v1677 = vmul.f32 %v1641, %v1645
      %v1678 = vadd.f32 %v1578, %v1646
      %v1679 = vadd.f32 %v1579, %v1647
      %v1680 = vadd.f32 %v1580, %v1648
      %v1681 = vadd.f32 %v1581, %v1649
      %v1682 = vadd.f32 %v1582, %v1650
      %v1683 = vadd.f32 %v1583, %v1651
      %v1684 = vadd.f32 %v1584, %v1652
      %v1685 = vadd.f32 %v1585, %v1653
      %v1686 = vadd.f32 %v1586, %v1654
      %v1687 = vadd.f32 %v1587, %v1655
      %v1688 = vadd.f32 %v1588, %v1656
      %v1689 = vadd.f32 %v1589, %v1657
      %v1690 = vadd.f32 %v1590, %v1658
      %v1691 = vadd.f32 %v1591, %v1659
      %v1692 = vadd.f32 %v1592, %v1660
      %v1693 = vadd.f32 %v1593, %v1661
      %v1694 = vadd.f32 %v1594, %v1662
      %v1695 = vadd.f32 %v1595, %v1663
      %v1696 = vadd.f32 %v1596, %v1664
      %v1697 = vadd.f32 %v1597, %v1665
      %v1698 = vadd.f32 %v1598, %v1666
      %v1699 = vadd.f32 %v1599, %v1667
      %v1700 = vadd.f32 %v1600, %v1668
      %v1701 = vadd.f32 %v1601, %v1669
      %v1702 = vadd.f32 %v1602, %v1670
      %v1703 = vadd.f32 %v1603, %v1671
      %v1704 = vadd.f32 %v1604, %v1672
      %v1705 = vadd.f32 %v1605, %v1673
      %v1706 = vadd.f32 %v1606, %v1674
      %v1707 = vadd.f32 %v1607, %v1675
      %v1708 = vadd.f32 %v1608, %v1676
      %v1709 = vadd.f32 %v1609, %v1677
      %v1710 = vld [vmem:[%s4] sm:$0x1]
      %v1712 = vlaneseq
      %v1713 = vshrl.u32 %v1712, 7
      %v1714 = vsub.s32 0, %v1713
      %v1715 = vrot.slane %v1710, %v1714
      %v1717 = vadd.f32 %v1678, %v1715
      %v1718 = vadd.f32 %v1679, %v1715
      %v1719 = vadd.f32 %v1680, %v1715
      %v1720 = vadd.f32 %v1681, %v1715
      %v1721 = vadd.f32 %v1682, %v1715
      %v1722 = vadd.f32 %v1683, %v1715
      %v1723 = vadd.f32 %v1684, %v1715
      %v1724 = vadd.f32 %v1685, %v1715
      %v1725 = vadd.f32 %v1686, %v1715
      %v1726 = vadd.f32 %v1687, %v1715
      %v1727 = vadd.f32 %v1688, %v1715
      %v1728 = vadd.f32 %v1689, %v1715
      %v1729 = vadd.f32 %v1690, %v1715
      %v1730 = vadd.f32 %v1691, %v1715
      %v1731 = vadd.f32 %v1692, %v1715
      %v1732 = vadd.f32 %v1693, %v1715
      %v1733 = vadd.f32 %v1694, %v1715
      %v1734 = vadd.f32 %v1695, %v1715
      %v1735 = vadd.f32 %v1696, %v1715
      %v1736 = vadd.f32 %v1697, %v1715
      %v1737 = vadd.f32 %v1698, %v1715
      %v1738 = vadd.f32 %v1699, %v1715
      %v1739 = vadd.f32 %v1700, %v1715
      %v1740 = vadd.f32 %v1701, %v1715
      %v1741 = vadd.f32 %v1702, %v1715
      %v1742 = vadd.f32 %v1703, %v1715
      %v1743 = vadd.f32 %v1704, %v1715
      %v1744 = vadd.f32 %v1705, %v1715
      %v1745 = vadd.f32 %v1706, %v1715
      %v1746 = vadd.f32 %v1707, %v1715
      %v1747 = vadd.f32 %v1708, %v1715
      %v1748 = vadd.f32 %v1709, %v1715
      %v1749 = vmax.f32 %v1717, 0.0
      %v1750 = vmax.f32 %v1718, 0.0
      %v1751 = vmax.f32 %v1719, 0.0
      %v1752 = vmax.f32 %v1720, 0.0
      %v1753 = vmax.f32 %v1721, 0.0
      %v1754 = vmax.f32 %v1722, 0.0
      %v1755 = vmax.f32 %v1723, 0.0
      %v1756 = vmax.f32 %v1724, 0.0
      %v1757 = vmax.f32 %v1725, 0.0
      %v1758 = vmax.f32 %v1726, 0.0
      %v1759 = vmax.f32 %v1727, 0.0
      %v1760 = vmax.f32 %v1728, 0.0
      %v1761 = vmax.f32 %v1729, 0.0
      %v1762 = vmax.f32 %v1730, 0.0
      %v1763 = vmax.f32 %v1731, 0.0
      %v1764 = vmax.f32 %v1732, 0.0
      %v1765 = vmax.f32 %v1733, 0.0
      %v1766 = vmax.f32 %v1734, 0.0
      %v1767 = vmax.f32 %v1735, 0.0
      %v1768 = vmax.f32 %v1736, 0.0
      %v1769 = vmax.f32 %v1737, 0.0
      %v1770 = vmax.f32 %v1738, 0.0
      %v1771 = vmax.f32 %v1739, 0.0
      %v1772 = vmax.f32 %v1740, 0.0
      %v1773 = vmax.f32 %v1741, 0.0
      %v1774 = vmax.f32 %v1742, 0.0
      %v1775 = vmax.f32 %v1743, 0.0
      %v1776 = vmax.f32 %v1744, 0.0
      %v1777 = vmax.f32 %v1745, 0.0
      %v1778 = vmax.f32 %v1746, 0.0
      %v1779 = vmax.f32 %v1747, 0.0
      %v1780 = vmax.f32 %v1748, 0.0
      %v1781 = vmin.f32 %v1749, 6.0
      %v1782 = vmin.f32 %v1750, 6.0
      %v1783 = vmin.f32 %v1751, 6.0
      %v1784 = vmin.f32 %v1752, 6.0
      %v1785 = vmin.f32 %v1753, 6.0
      %v1786 = vmin.f32 %v1754, 6.0
      %v1787 = vmin.f32 %v1755, 6.0
      %v1788 = vmin.f32 %v1756, 6.0
      %v1789 = vmin.f32 %v1757, 6.0
      %v1790 = vmin.f32 %v1758, 6.0
      %v1791 = vmin.f32 %v1759, 6.0
      %v1792 = vmin.f32 %v1760, 6.0
      %v1793 = vmin.f32 %v1761, 6.0
      %v1794 = vmin.f32 %v1762, 6.0
      %v1795 = vmin.f32 %v1763, 6.0
      %v1796 = vmin.f32 %v1764, 6.0
      %v1797 = vmin.f32 %v1765, 6.0
      %v1798 = vmin.f32 %v1766, 6.0
      %v1799 = vmin.f32 %v1767, 6.0
      %v1800 = vmin.f32 %v1768, 6.0
      %v1801 = vmin.f32 %v1769, 6.0
      %v1802 = vmin.f32 %v1770, 6.0
      %v1803 = vmin.f32 %v1771, 6.0
      %v1804 = vmin.f32 %v1772, 6.0
      %v1805 = vmin.f32 %v1773, 6.0
      %v1806 = vmin.f32 %v1774, 6.0
      %v1807 = vmin.f32 %v1775, 6.0
      %v1808 = vmin.f32 %v1776, 6.0
      %v1809 = vmin.f32 %v1777, 6.0
      %v1810 = vmin.f32 %v1778, 6.0
      %v1811 = vmin.f32 %v1779, 6.0
      %v1812 = vmin.f32 %v1780, 6.0
      %v1813 = vld [vmem:[%s5] sm:$0xff]
      %v1814 = vld [vmem:[%s5 + $0x8] sm:$0xff]
      %v1815 = vld [vmem:[%s5 + $0x10] sm:$0xff]
      %v1816 = vld [vmem:[%s5 + $0x18] sm:$0xff]
      %v1817 = vld [vmem:[%s6] sm:$0x1]
      %v1819 = vlaneseq
      %v1820 = vshrl.u32 %v1819, 7
      %v1821 = vsub.s32 0, %v1820
      %v1822 = vrot.slane %v1817, %v1821
      %v1825 = vsel %vm306, %v1781, 0
      %v1828 = vsel %vm306, %v1782, 0
      %v1831 = vsel %vm306, %v1783, 0
      %v1834 = vsel %vm306, %v1784, 0
      %v1837 = vsel %vm306, %v1785, 0
      %v1840 = vsel %vm306, %v1786, 0
      %v1843 = vsel %vm306, %v1787, 0
      %v1846 = vsel %vm306, %v1788, 0
      %v1849 = vsel %vm306, %v1789, 0
      %v1852 = vsel %vm306, %v1790, 0
      %v1855 = vsel %vm306, %v1791, 0
      %v1858 = vsel %vm306, %v1792, 0
      %v1861 = vsel %vm306, %v1793, 0
      %v1864 = vsel %vm306, %v1794, 0
      %v1867 = vsel %vm306, %v1795, 0
      %v1870 = vsel %vm306, %v1796, 0
      %v1873 = vsel %vm306, %v1797, 0
      %v1876 = vsel %vm306, %v1798, 0
      %v1879 = vsel %vm306, %v1799, 0
      %v1882 = vsel %vm306, %v1800, 0
      %v1885 = vsel %vm306, %v1801, 0
      %v1888 = vsel %vm306, %v1802, 0
      %v1891 = vsel %vm306, %v1803, 0
      %v1894 = vsel %vm306, %v1804, 0
      %v1897 = vsel %vm306, %v1805, 0
      %v1900 = vsel %vm306, %v1806, 0
      %v1903 = vsel %vm306, %v1807, 0
      %v1906 = vsel %vm306, %v1808, 0
      %v1909 = vsel %vm306, %v1809, 0
      %v1912 = vsel %vm306, %v1810, 0
      %v1915 = vsel %vm306, %v1811, 0
      %v1918 = vsel %vm306, %v1812, 0
      %1920 = vmatprep.subr.mxu0 0.0
      %1921 = vmatpush1.msra.mxu0 0.0
      %1922 = vmatprep.subr.mxu0 0.0
      %1923 = vmatpush1.msra.mxu0 0.0
      %1924 = vmatprep.subr.mxu0 0.0
      %1925 = vmatpush1.msra.mxu0 0.0
      %1926 = vmatprep.subr.mxu0 0.0
      %1927 = vmatpush1.msra.mxu0 0.0
      %1928 = vmatprep.subr.mxu0 0.0
      %1929 = vmatpush1.msra.mxu0 0.0
      %1930 = vmatprep.subr.mxu0 0.0
      %1931 = vmatpush1.msra.mxu0 0.0
      %1932 = vmatprep.subr.mxu0 0.0
      %1933 = vmatpush1.msra.mxu0 0.0
      %1934 = vmatprep.subr.mxu0 0.0
      %1935 = vmatpush1.msra.mxu0 0.0
      %1936 = vmatprep.subr.mxu0 0.0
      %1937 = vmatpush1.msra.mxu0 0.0
      %1938 = vmatprep.subr.mxu0 0.0
      %1939 = vmatpush1.msra.mxu0 0.0
      %1940 = vmatprep.subr.mxu0 0.0
      %1941 = vmatpush1.msra.mxu0 0.0
      %1942 = vmatprep.subr.mxu0 0.0
      %1943 = vmatpush1.msra.mxu0 0.0
      %1944 = vmatprep.subr.mxu0 0.0
      %1945 = vmatpush1.msra.mxu0 %v1816
      %1946 = vmatprep.subr.mxu0 0.0
      %1947 = vmatpush1.msra.mxu0 %v1815
      %1948 = vmatprep.subr.mxu0 0.0
      %1949 = vmatpush1.msra.mxu0 %v1814
      %1950 = vmatprep.subr.mxu0 0.0
      %1951 = vmatpush1.msra.mxu0 %v1813
      %1952 = vmatprep.subr.mxu0 0.0
      %1953 = vmatpush2.msra.mxu0 0.0
      %1954 = vmatprep.subr.mxu0 0.0
      %1955 = vmatpush2.msra.mxu0 0.0
      %1956 = vmatprep.subr.mxu0 0.0
      %1957 = vmatpush2.msra.mxu0 0.0
      %1958 = vmatprep.subr.mxu0 0.0
      %1959 = vmatpush2.msra.mxu0 0.0
      %1960 = vmatprep.subr.mxu0 0.0
      %1961 = vmatpush2.msra.mxu0 0.0
      %1962 = vmatprep.subr.mxu0 0.0
      %1963 = vmatpush2.msra.mxu0 0.0
      %1964 = vmatprep.subr.mxu0 0.0
      %1965 = vmatpush2.msra.mxu0 0.0
      %1966 = vmatprep.subr.mxu0 0.0
      %1967 = vmatpush2.msra.mxu0 0.0
      %1968 = vmatprep.subr.mxu0 0.0
      %1969 = vmatpush2.msra.mxu0 0.0
      %1970 = vmatprep.subr.mxu0 0.0
      %1971 = vmatpush2.msra.mxu0 0.0
      %1972 = vmatprep.subr.mxu0 0.0
      %1973 = vmatpush2.msra.mxu0 0.0
      %1974 = vmatprep.subr.mxu0 0.0
      %1975 = vmatpush2.msra.mxu0 0.0
      %1976 = vmatprep.subr.mxu0 0.0
      %1977 = vmatpush2.msra.mxu0 0.0
      %1978 = vmatprep.subr.mxu0 0.0
      %1979 = vmatpush2.msra.mxu0 0.0
      %1980 = vmatprep.subr.mxu0 0.0
      %1981 = vmatpush2.msra.mxu0 0.0
      %1982 = vmatprep.subr.mxu0 0.0
      %1983 = vmatpush2.msra.mxu0 0.0
      %1984 = vmatprep.mubr.f32.mxu0 0.0
      %1985 = vmatmul.mubr.f32.gmra.mxu0 %v1825
      %v1986 = vpop.f32.mrf.mxu0
      %v1987 = vadd.f32 %v1822, %v1986
      %v1988 = vpop.f32.mrf.mxu0
      %1989 = vmatprep.mubr.f32.mxu0 0.0
      %1990 = vmatmul.mubr.f32.gmra.mxu0 %v1828
      %v1991 = vpop.f32.mrf.mxu0
      %v1992 = vadd.f32 %v1822, %v1991
      %v1993 = vpop.f32.mrf.mxu0
      %1994 = vmatprep.mubr.f32.mxu0 0.0
      %1995 = vmatmul.mubr.f32.gmra.mxu0 %v1831
      %v1996 = vpop.f32.mrf.mxu0
      %v1997 = vadd.f32 %v1822, %v1996
      %v1998 = vpop.f32.mrf.mxu0
      %1999 = vmatprep.mubr.f32.mxu0 0.0
      %2000 = vmatmul.mubr.f32.gmra.mxu0 %v1834
      %v2001 = vpop.f32.mrf.mxu0
      %v2002 = vadd.f32 %v1822, %v2001
      %v2003 = vpop.f32.mrf.mxu0
      %2004 = vmatprep.mubr.f32.mxu0 0.0
      %2005 = vmatmul.mubr.f32.gmra.mxu0 %v1837
      %v2006 = vpop.f32.mrf.mxu0
      %v2007 = vadd.f32 %v1822, %v2006
      %v2008 = vpop.f32.mrf.mxu0
      %2009 = vmatprep.mubr.f32.mxu0 0.0
      %2010 = vmatmul.mubr.f32.gmra.mxu0 %v1840
      %v2011 = vpop.f32.mrf.mxu0
      %v2012 = vadd.f32 %v1822, %v2011
      %v2013 = vpop.f32.mrf.mxu0
      %2014 = vmatprep.mubr.f32.mxu0 0.0
      %2015 = vmatmul.mubr.f32.gmra.mxu0 %v1843
      %v2016 = vpop.f32.mrf.mxu0
      %v2017 = vadd.f32 %v1822, %v2016
      %v2018 = vpop.f32.mrf.mxu0
      %2019 = vmatprep.mubr.f32.mxu0 0.0
      %2020 = vmatmul.mubr.f32.gmra.mxu0 %v1846
      %v2021 = vpop.f32.mrf.mxu0
      %v2022 = vadd.f32 %v1822, %v2021
      %v2023 = vpop.f32.mrf.mxu0
      %2024 = vmatprep.mubr.f32.mxu0 0.0
      %2025 = vmatmul.mubr.f32.gmra.mxu0 %v1849
      %v2026 = vpop.f32.mrf.mxu0
      %v2027 = vadd.f32 %v1822, %v2026
      %v2028 = vpop.f32.mrf.mxu0
      %2029 = vmatprep.mubr.f32.mxu0 0.0
      %2030 = vmatmul.mubr.f32.gmra.mxu0 %v1852
      %v2031 = vpop.f32.mrf.mxu0
      %v2032 = vadd.f32 %v1822, %v2031
      %v2033 = vpop.f32.mrf.mxu0
      %2034 = vmatprep.mubr.f32.mxu0 0.0
      %2035 = vmatmul.mubr.f32.gmra.mxu0 %v1855
      %v2036 = vpop.f32.mrf.mxu0
      %v2037 = vadd.f32 %v1822, %v2036
      %v2038 = vpop.f32.mrf.mxu0
      %2039 = vmatprep.mubr.f32.mxu0 0.0
      %2040 = vmatmul.mubr.f32.gmra.mxu0 %v1858
      %v2041 = vpop.f32.mrf.mxu0
      %v2042 = vadd.f32 %v1822, %v2041
      %v2043 = vpop.f32.mrf.mxu0
      %2044 = vmatprep.mubr.f32.mxu0 0.0
      %2045 = vmatmul.mubr.f32.gmra.mxu0 %v1861
      %v2046 = vpop.f32.mrf.mxu0
      %v2047 = vadd.f32 %v1822, %v2046
      %v2048 = vpop.f32.mrf.mxu0
      %2049 = vmatprep.mubr.f32.mxu0 0.0
      %2050 = vmatmul.mubr.f32.gmra.mxu0 %v1864
      %v2051 = vpop.f32.mrf.mxu0
      %v2052 = vadd.f32 %v1822, %v2051
      %v2053 = vpop.f32.mrf.mxu0
      %2054 = vmatprep.mubr.f32.mxu0 0.0
      %2055 = vmatmul.mubr.f32.gmra.mxu0 %v1867
      %v2056 = vpop.f32.mrf.mxu0
      %v2057 = vadd.f32 %v1822, %v2056
      %v2058 = vpop.f32.mrf.mxu0
      %2059 = vmatprep.mubr.f32.mxu0 0.0
      %2060 = vmatmul.mubr.f32.gmra.mxu0 %v1870
      %v2061 = vpop.f32.mrf.mxu0
      %v2062 = vadd.f32 %v1822, %v2061
      %v2063 = vpop.f32.mrf.mxu0
      %2064 = vmatprep.mubr.f32.mxu0 0.0
      %2065 = vmatmul.mubr.f32.gmra.mxu0 %v1873
      %v2066 = vpop.f32.mrf.mxu0
      %v2067 = vadd.f32 %v1822, %v2066
      %v2068 = vpop.f32.mrf.mxu0
      %2069 = vmatprep.mubr.f32.mxu0 0.0
      %2070 = vmatmul.mubr.f32.gmra.mxu0 %v1876
      %v2071 = vpop.f32.mrf.mxu0
      %v2072 = vadd.f32 %v1822, %v2071
      %v2073 = vpop.f32.mrf.mxu0
      %2074 = vmatprep.mubr.f32.mxu0 0.0
      %2075 = vmatmul.mubr.f32.gmra.mxu0 %v1879
      %v2076 = vpop.f32.mrf.mxu0
      %v2077 = vadd.f32 %v1822, %v2076
      %v2078 = vpop.f32.mrf.mxu0
      %2079 = vmatprep.mubr.f32.mxu0 0.0
      %2080 = vmatmul.mubr.f32.gmra.mxu0 %v1882
      %v2081 = vpop.f32.mrf.mxu0
      %v2082 = vadd.f32 %v1822, %v2081
      %v2083 = vpop.f32.mrf.mxu0
      %2084 = vmatprep.mubr.f32.mxu0 0.0
      %2085 = vmatmul.mubr.f32.gmra.mxu0 %v1885
      %v2086 = vpop.f32.mrf.mxu0
      %v2087 = vadd.f32 %v1822, %v2086
      %v2088 = vpop.f32.mrf.mxu0
      %2089 = vmatprep.mubr.f32.mxu0 0.0
      %2090 = vmatmul.mubr.f32.gmra.mxu0 %v1888
      %v2091 = vpop.f32.mrf.mxu0
      %v2092 = vadd.f32 %v1822, %v2091
      %v2093 = vpop.f32.mrf.mxu0
      %2094 = vmatprep.mubr.f32.mxu0 0.0
      %2095 = vmatmul.mubr.f32.gmra.mxu0 %v1891
      %v2096 = vpop.f32.mrf.mxu0
      %v2097 = vadd.f32 %v1822, %v2096
      %v2098 = vpop.f32.mrf.mxu0
      %2099 = vmatprep.mubr.f32.mxu0 0.0
      %2100 = vmatmul.mubr.f32.gmra.mxu0 %v1894
      %v2101 = vpop.f32.mrf.mxu0
      %v2102 = vadd.f32 %v1822, %v2101
      %v2103 = vpop.f32.mrf.mxu0
      %2104 = vmatprep.mubr.f32.mxu0 0.0
      %2105 = vmatmul.mubr.f32.gmra.mxu0 %v1897
      %v2106 = vpop.f32.mrf.mxu0
      %v2107 = vadd.f32 %v1822, %v2106
      %v2108 = vpop.f32.mrf.mxu0
      %2109 = vmatprep.mubr.f32.mxu0 0.0
      %2110 = vmatmul.mubr.f32.gmra.mxu0 %v1900
      %v2111 = vpop.f32.mrf.mxu0
      %v2112 = vadd.f32 %v1822, %v2111
      %v2113 = vpop.f32.mrf.mxu0
      %2114 = vmatprep.mubr.f32.mxu0 0.0
      %2115 = vmatmul.mubr.f32.gmra.mxu0 %v1903
      %v2116 = vpop.f32.mrf.mxu0
      %v2117 = vadd.f32 %v1822, %v2116
      %v2118 = vpop.f32.mrf.mxu0
      %2119 = vmatprep.mubr.f32.mxu0 0.0
      %2120 = vmatmul.mubr.f32.gmra.mxu0 %v1906
      %v2121 = vpop.f32.mrf.mxu0
      %v2122 = vadd.f32 %v1822, %v2121
      %v2123 = vpop.f32.mrf.mxu0
      %2124 = vmatprep.mubr.f32.mxu0 0.0
      %2125 = vmatmul.mubr.f32.gmra.mxu0 %v1909
      %v2126 = vpop.f32.mrf.mxu0
      %v2127 = vadd.f32 %v1822, %v2126
      %v2128 = vpop.f32.mrf.mxu0
      %2129 = vmatprep.mubr.f32.mxu0 0.0
      %2130 = vmatmul.mubr.f32.gmra.mxu0 %v1912
      %v2131 = vpop.f32.mrf.mxu0
      %v2132 = vadd.f32 %v1822, %v2131
      %v2133 = vpop.f32.mrf.mxu0
      %2134 = vmatprep.mubr.f32.mxu0 0.0
      %2135 = vmatmul.mubr.f32.gmra.mxu0 %v1915
      %v2136 = vpop.f32.mrf.mxu0
      %v2137 = vadd.f32 %v1822, %v2136
      %v2138 = vpop.f32.mrf.mxu0
      %2139 = vmatprep.mubr.f32.mxu0 0.0
      %2140 = vmatmul.mubr.f32.gmra.mxu0 %v1918
      %v2141 = vpop.f32.mrf.mxu0
      %v2142 = vadd.f32 %v1822, %v2141
      %v2143 = vpop.f32.mrf.mxu0
      %2144 = vdwg.mxu0
      %v2145 = vld [vmem:[%s7] sm:$0xff]
      %2146 = vmatprep.subr.mxu0 0.0
      %2147 = vmatpush1.msra.mxu0 0.0
      %2148 = vmatprep.subr.mxu0 0.0
      %2149 = vmatpush1.msra.mxu0 0.0
      %2150 = vmatprep.subr.mxu0 0.0
      %2151 = vmatpush1.msra.mxu0 0.0
      %2152 = vmatprep.subr.mxu0 0.0
      %2153 = vmatpush1.msra.mxu0 0.0
      %2154 = vmatprep.subr.mxu0 0.0
      %2155 = vmatpush1.msra.mxu0 0.0
      %2156 = vmatprep.subr.mxu0 0.0
      %2157 = vmatpush1.msra.mxu0 0.0
      %2158 = vmatprep.subr.mxu0 0.0
      %2159 = vmatpush1.msra.mxu0 0.0
      %2160 = vmatprep.subr.mxu0 0.0
      %2161 = vmatpush1.msra.mxu0 0.0
      %2162 = vmatprep.subr.mxu0 0.0
      %2163 = vmatpush1.msra.mxu0 0.0
      %2164 = vmatprep.subr.mxu0 0.0
      %2165 = vmatpush1.msra.mxu0 0.0
      %2166 = vmatprep.subr.mxu0 0.0
      %2167 = vmatpush1.msra.mxu0 0.0
      %2168 = vmatprep.subr.mxu0 0.0
      %2169 = vmatpush1.msra.mxu0 0.0
      %2170 = vmatprep.subr.mxu0 0.0
      %2171 = vmatpush1.msra.mxu0 0.0
      %2172 = vmatprep.subr.mxu0 0.0
      %2173 = vmatpush1.msra.mxu0 0.0
      %2174 = vmatprep.subr.mxu0 0.0
      %2175 = vmatpush1.msra.mxu0 0.0
      %2176 = vmatprep.subr.mxu0 0.0
      %2177 = vmatpush1.msra.mxu0 %v2145
      %2178 = vmatprep.subr.mxu0 0.0
      %2179 = vmatpush2.msra.mxu0 0.0
      %2180 = vmatprep.subr.mxu0 0.0
      %2181 = vmatpush2.msra.mxu0 0.0
      %2182 = vmatprep.subr.mxu0 0.0
      %2183 = vmatpush2.msra.mxu0 0.0
      %2184 = vmatprep.subr.mxu0 0.0
      %2185 = vmatpush2.msra.mxu0 0.0
      %2186 = vmatprep.subr.mxu0 0.0
      %2187 = vmatpush2.msra.mxu0 0.0
      %2188 = vmatprep.subr.mxu0 0.0
      %2189 = vmatpush2.msra.mxu0 0.0
      %2190 = vmatprep.subr.mxu0 0.0
      %2191 = vmatpush2.msra.mxu0 0.0
      %2192 = vmatprep.subr.mxu0 0.0
      %2193 = vmatpush2.msra.mxu0 0.0
      %2194 = vmatprep.subr.mxu0 0.0
      %2195 = vmatpush2.msra.mxu0 0.0
      %2196 = vmatprep.subr.mxu0 0.0
      %2197 = vmatpush2.msra.mxu0 0.0
      %2198 = vmatprep.subr.mxu0 0.0
      %2199 = vmatpush2.msra.mxu0 0.0
      %2200 = vmatprep.subr.mxu0 0.0
      %2201 = vmatpush2.msra.mxu0 0.0
      %2202 = vmatprep.subr.mxu0 0.0
      %2203 = vmatpush2.msra.mxu0 0.0
      %2204 = vmatprep.subr.mxu0 0.0
      %2205 = vmatpush2.msra.mxu0 0.0
      %2206 = vmatprep.subr.mxu0 0.0
      %2207 = vmatpush2.msra.mxu0 0.0
      %2208 = vmatprep.subr.mxu0 0.0
      %2209 = vmatpush2.msra.mxu0 0.0
      %2210 = vmatprep.mubr.f32.mxu0 0.0
      %2211 = vmatmul.mubr.f32.gmra.mxu0 %v391
      %v2212 = vpop.f32.mrf.mxu0
      %v2213 = vadd.f32 0.0, %v2212
      %v2214 = vpop.f32.mrf.mxu0
      %2215 = vmatprep.mubr.f32.mxu0 0.0
      %2216 = vmatmul.mubr.f32.gmra.mxu0 %v394
      %v2217 = vpop.f32.mrf.mxu0
      %v2218 = vadd.f32 0.0, %v2217
      %v2219 = vpop.f32.mrf.mxu0
      %2220 = vmatprep.mubr.f32.mxu0 0.0
      %2221 = vmatmul.mubr.f32.gmra.mxu0 %v397
      %v2222 = vpop.f32.mrf.mxu0
      %v2223 = vadd.f32 0.0, %v2222
      %v2224 = vpop.f32.mrf.mxu0
      %2225 = vmatprep.mubr.f32.mxu0 0.0
      %2226 = vmatmul.mubr.f32.gmra.mxu0 %v400
      %v2227 = vpop.f32.mrf.mxu0
      %v2228 = vadd.f32 0.0, %v2227
      %v2229 = vpop.f32.mrf.mxu0
      %2230 = vmatprep.mubr.f32.mxu0 0.0
      %2231 = vmatmul.mubr.f32.gmra.mxu0 %v403
      %v2232 = vpop.f32.mrf.mxu0
      %v2233 = vadd.f32 0.0, %v2232
      %v2234 = vpop.f32.mrf.mxu0
      %2235 = vmatprep.mubr.f32.mxu0 0.0
      %2236 = vmatmul.mubr.f32.gmra.mxu0 %v406
      %v2237 = vpop.f32.mrf.mxu0
      %v2238 = vadd.f32 0.0, %v2237
      %v2239 = vpop.f32.mrf.mxu0
      %2240 = vmatprep.mubr.f32.mxu0 0.0
      %2241 = vmatmul.mubr.f32.gmra.mxu0 %v409
      %v2242 = vpop.f32.mrf.mxu0
      %v2243 = vadd.f32 0.0, %v2242
      %v2244 = vpop.f32.mrf.mxu0
      %2245 = vmatprep.mubr.f32.mxu0 0.0
      %2246 = vmatmul.mubr.f32.gmra.mxu0 %v412
      %v2247 = vpop.f32.mrf.mxu0
      %v2248 = vadd.f32 0.0, %v2247
      %v2249 = vpop.f32.mrf.mxu0
      %2250 = vmatprep.mubr.f32.mxu0 0.0
      %2251 = vmatmul.mubr.f32.gmra.mxu0 %v415
      %v2252 = vpop.f32.mrf.mxu0
      %v2253 = vadd.f32 0.0, %v2252
      %v2254 = vpop.f32.mrf.mxu0
      %2255 = vmatprep.mubr.f32.mxu0 0.0
      %2256 = vmatmul.mubr.f32.gmra.mxu0 %v418
      %v2257 = vpop.f32.mrf.mxu0
      %v2258 = vadd.f32 0.0, %v2257
      %v2259 = vpop.f32.mrf.mxu0
      %2260 = vmatprep.mubr.f32.mxu0 0.0
      %2261 = vmatmul.mubr.f32.gmra.mxu0 %v421
      %v2262 = vpop.f32.mrf.mxu0
      %v2263 = vadd.f32 0.0, %v2262
      %v2264 = vpop.f32.mrf.mxu0
      %2265 = vmatprep.mubr.f32.mxu0 0.0
      %2266 = vmatmul.mubr.f32.gmra.mxu0 %v424
      %v2267 = vpop.f32.mrf.mxu0
      %v2268 = vadd.f32 0.0, %v2267
      %v2269 = vpop.f32.mrf.mxu0
      %2270 = vmatprep.mubr.f32.mxu0 0.0
      %2271 = vmatmul.mubr.f32.gmra.mxu0 %v427
      %v2272 = vpop.f32.mrf.mxu0
      %v2273 = vadd.f32 0.0, %v2272
      %v2274 = vpop.f32.mrf.mxu0
      %2275 = vmatprep.mubr.f32.mxu0 0.0
      %2276 = vmatmul.mubr.f32.gmra.mxu0 %v430
      %v2277 = vpop.f32.mrf.mxu0
      %v2278 = vadd.f32 0.0, %v2277
      %v2279 = vpop.f32.mrf.mxu0
      %2280 = vmatprep.mubr.f32.mxu0 0.0
      %2281 = vmatmul.mubr.f32.gmra.mxu0 %v433
      %v2282 = vpop.f32.mrf.mxu0
      %v2283 = vadd.f32 0.0, %v2282
      %v2284 = vpop.f32.mrf.mxu0
      %2285 = vmatprep.mubr.f32.mxu0 0.0
      %2286 = vmatmul.mubr.f32.gmra.mxu0 %v436
      %v2287 = vpop.f32.mrf.mxu0
      %v2288 = vadd.f32 0.0, %v2287
      %v2289 = vpop.f32.mrf.mxu0
      %2290 = vmatprep.mubr.f32.mxu0 0.0
      %2291 = vmatmul.mubr.f32.gmra.mxu0 %v439
      %v2292 = vpop.f32.mrf.mxu0
      %v2293 = vadd.f32 0.0, %v2292
      %v2294 = vpop.f32.mrf.mxu0
      %2295 = vmatprep.mubr.f32.mxu0 0.0
      %2296 = vmatmul.mubr.f32.gmra.mxu0 %v442
      %v2297 = vpop.f32.mrf.mxu0
      %v2298 = vadd.f32 0.0, %v2297
      %v2299 = vpop.f32.mrf.mxu0
      %2300 = vmatprep.mubr.f32.mxu0 0.0
      %2301 = vmatmul.mubr.f32.gmra.mxu0 %v445
      %v2302 = vpop.f32.mrf.mxu0
      %v2303 = vadd.f32 0.0, %v2302
      %v2304 = vpop.f32.mrf.mxu0
      %2305 = vmatprep.mubr.f32.mxu0 0.0
      %2306 = vmatmul.mubr.f32.gmra.mxu0 %v448
      %v2307 = vpop.f32.mrf.mxu0
      %v2308 = vadd.f32 0.0, %v2307
      %v2309 = vpop.f32.mrf.mxu0
      %2310 = vmatprep.mubr.f32.mxu0 0.0
      %2311 = vmatmul.mubr.f32.gmra.mxu0 %v451
      %v2312 = vpop.f32.mrf.mxu0
      %v2313 = vadd.f32 0.0, %v2312
      %v2314 = vpop.f32.mrf.mxu0
      %2315 = vmatprep.mubr.f32.mxu0 0.0
      %2316 = vmatmul.mubr.f32.gmra.mxu0 %v454
      %v2317 = vpop.f32.mrf.mxu0
      %v2318 = vadd.f32 0.0, %v2317
      %v2319 = vpop.f32.mrf.mxu0
      %2320 = vmatprep.mubr.f32.mxu0 0.0
      %2321 = vmatmul.mubr.f32.gmra.mxu0 %v457
      %v2322 = vpop.f32.mrf.mxu0
      %v2323 = vadd.f32 0.0, %v2322
      %v2324 = vpop.f32.mrf.mxu0
      %2325 = vmatprep.mubr.f32.mxu0 0.0
      %2326 = vmatmul.mubr.f32.gmra.mxu0 %v460
      %v2327 = vpop.f32.mrf.mxu0
      %v2328 = vadd.f32 0.0, %v2327
      %v2329 = vpop.f32.mrf.mxu0
      %2330 = vmatprep.mubr.f32.mxu0 0.0
      %2331 = vmatmul.mubr.f32.gmra.mxu0 %v463
      %v2332 = vpop.f32.mrf.mxu0
      %v2333 = vadd.f32 0.0, %v2332
      %v2334 = vpop.f32.mrf.mxu0
      %2335 = vmatprep.mubr.f32.mxu0 0.0
      %2336 = vmatmul.mubr.f32.gmra.mxu0 %v466
      %v2337 = vpop.f32.mrf.mxu0
      %v2338 = vadd.f32 0.0, %v2337
      %v2339 = vpop.f32.mrf.mxu0
      %2340 = vmatprep.mubr.f32.mxu0 0.0
      %2341 = vmatmul.mubr.f32.gmra.mxu0 %v469
      %v2342 = vpop.f32.mrf.mxu0
      %v2343 = vadd.f32 0.0, %v2342
      %v2344 = vpop.f32.mrf.mxu0
      %2345 = vmatprep.mubr.f32.mxu0 0.0
      %2346 = vmatmul.mubr.f32.gmra.mxu0 %v472
      %v2347 = vpop.f32.mrf.mxu0
      %v2348 = vadd.f32 0.0, %v2347
      %v2349 = vpop.f32.mrf.mxu0
      %2350 = vmatprep.mubr.f32.mxu0 0.0
      %2351 = vmatmul.mubr.f32.gmra.mxu0 %v475
      %v2352 = vpop.f32.mrf.mxu0
      %v2353 = vadd.f32 0.0, %v2352
      %v2354 = vpop.f32.mrf.mxu0
      %2355 = vmatprep.mubr.f32.mxu0 0.0
      %2356 = vmatmul.mubr.f32.gmra.mxu0 %v478
      %v2357 = vpop.f32.mrf.mxu0
      %v2358 = vadd.f32 0.0, %v2357
      %v2359 = vpop.f32.mrf.mxu0
      %2360 = vmatprep.mubr.f32.mxu0 0.0
      %2361 = vmatmul.mubr.f32.gmra.mxu0 %v481
      %v2362 = vpop.f32.mrf.mxu0
      %v2363 = vadd.f32 0.0, %v2362
      %v2364 = vpop.f32.mrf.mxu0
      %2365 = vmatprep.mubr.f32.mxu0 0.0
      %2366 = vmatmul.mubr.f32.gmra.mxu0 %v484
      %v2367 = vpop.f32.mrf.mxu0
      %v2368 = vadd.f32 0.0, %v2367
      %v2369 = vpop.f32.mrf.mxu0
      %2370 = vdwg.mxu0
      %v2371 = vadd.f32 %v1987, %v2213
      %v2372 = vadd.f32 %v1992, %v2218
      %v2373 = vadd.f32 %v1997, %v2223
      %v2374 = vadd.f32 %v2002, %v2228
      %v2375 = vadd.f32 %v2007, %v2233
      %v2376 = vadd.f32 %v2012, %v2238
      %v2377 = vadd.f32 %v2017, %v2243
      %v2378 = vadd.f32 %v2022, %v2248
      %v2379 = vadd.f32 %v2027, %v2253
      %v2380 = vadd.f32 %v2032, %v2258
      %v2381 = vadd.f32 %v2037, %v2263
      %v2382 = vadd.f32 %v2042, %v2268
      %v2383 = vadd.f32 %v2047, %v2273
      %v2384 = vadd.f32 %v2052, %v2278
      %v2385 = vadd.f32 %v2057, %v2283
      %v2386 = vadd.f32 %v2062, %v2288
      %v2387 = vadd.f32 %v2067, %v2293
      %v2388 = vadd.f32 %v2072, %v2298
      %v2389 = vadd.f32 %v2077, %v2303
      %v2390 = vadd.f32 %v2082, %v2308
      %v2391 = vadd.f32 %v2087, %v2313
      %v2392 = vadd.f32 %v2092, %v2318
      %v2393 = vadd.f32 %v2097, %v2323
      %v2394 = vadd.f32 %v2102, %v2328
      %v2395 = vadd.f32 %v2107, %v2333
      %v2396 = vadd.f32 %v2112, %v2338
      %v2397 = vadd.f32 %v2117, %v2343
      %v2398 = vadd.f32 %v2122, %v2348
      %v2399 = vadd.f32 %v2127, %v2353
      %v2400 = vadd.f32 %v2132, %v2358
      %v2401 = vadd.f32 %v2137, %v2363
      %v2402 = vadd.f32 %v2142, %v2368
      %2403 = vst [vmem:[%s305] sm:$0xff] %v2371
      %2404 = vst [vmem:[%s305 + $0x8] sm:$0xff] %v2372
      %2405 = vst [vmem:[%s305 + $0x10] sm:$0xff] %v2373
      %2406 = vst [vmem:[%s305 + $0x18] sm:$0xff] %v2374
      %2407 = vst [vmem:[%s305 + $0x20] sm:$0xff] %v2375
      %2408 = vst [vmem:[%s305 + $0x28] sm:$0xff] %v2376
      %2409 = vst [vmem:[%s305 + $0x30] sm:$0xff] %v2377
      %2410 = vst [vmem:[%s305 + $0x38] sm:$0xff] %v2378
      %2411 = vst [vmem:[%s305 + $0x40] sm:$0xff] %v2379
      %2412 = vst [vmem:[%s305 + $0x48] sm:$0xff] %v2380
      %2413 = vst [vmem:[%s305 + $0x50] sm:$0xff] %v2381
      %2414 = vst [vmem:[%s305 + $0x58] sm:$0xff] %v2382
      %2415 = vst [vmem:[%s305 + $0x60] sm:$0xff] %v2383
      %2416 = vst [vmem:[%s305 + $0x68] sm:$0xff] %v2384
      %2417 = vst [vmem:[%s305 + $0x70] sm:$0xff] %v2385
      %2418 = vst [vmem:[%s305 + $0x78] sm:$0xff] %v2386
      %2419 = vst [vmem:[%s305 + $0x80] sm:$0xff] %v2387
      %2420 = vst [vmem:[%s305 + $0x88] sm:$0xff] %v2388
      %2421 = vst [vmem:[%s305 + $0x90] sm:$0xff] %v2389
      %2422 = vst [vmem:[%s305 + $0x98] sm:$0xff] %v2390
      %2423 = vst [vmem:[%s305 + $0xa0] sm:$0xff] %v2391
      %2424 = vst [vmem:[%s305 + $0xa8] sm:$0xff] %v2392
      %2425 = vst [vmem:[%s305 + $0xb0] sm:$0xff] %v2393
      %2426 = vst [vmem:[%s305 + $0xb8] sm:$0xff] %v2394
      %2427 = vst [vmem:[%s305 + $0xc0] sm:$0xff] %v2395
      %2428 = vst [vmem:[%s305 + $0xc8] sm:$0xff] %v2396
      %2429 = vst [vmem:[%s305 + $0xd0] sm:$0xff] %v2397
      %2430 = vst [vmem:[%s305 + $0xd8] sm:$0xff] %v2398
      %2431 = vst [vmem:[%s305 + $0xe0] sm:$0xff] %v2399
      %2432 = vst [vmem:[%s305 + $0xe8] sm:$0xff] %v2400
      %2433 = vst [vmem:[%s305 + $0xf0] sm:$0xff] %v2401
      %2434 = vst [vmem:[%s305 + $0xf8] sm:$0xff] %v2402
      %p2435 = scmp.lt.s32.totalorder %s19, 1
      %s2436 = scalar_select %p2435, %s19, 1
      %s2437 = smul.addr %s2436, 32
      %s2438 = smul.addr %s2437, 8
      %s2439 = scalar_lea.vmem %s8, %s2438
      // Predicated region
      $region53: #{a_call__.1} parent=51 // pred_check
        %p2440 = pneg %p210
      $region54: #{a_call__.1} parent=51 // pred_check_branch
        %2442 = sbr.rel (%p2440) target = $region56
      $region55: #{a_call__.1} parent=51 // pred_region
        _
      $region56: #{a_call__.1} parent=51 // pred_fallthru
        _
    $region52: #{a_call__.1} parent=5 // pred_fallthru
      _
    %p2443 = scmp.le.s32.totalorder 2, %s14
    // Predicated region
    $region57: #{a_call__.1} parent=5 // pred_check
      %p2444 = pneg %p2443
    $region58: #{a_call__.1} parent=5 // pred_check_branch
      %2446 = sbr.rel (%p2444) target = $region60
    $region59: #{a_call__.1} parent=5 // pred_region
      %s2447 = ssub.s32 %s14, 2
      // Predicated region
      $region61: #{a_call__.1} parent=59 // pred_check
        %p2448 = pneg %p216
      $region62: #{a_call__.1} parent=59 // pred_check_branch
        %2450 = sbr.rel (%p2448) target = $region64
      $region63: #{a_call__.1} parent=59 // pred_region
        %p2451 = scmp.lt.s32.totalorder %s20, 1
        %s2452 = scalar_select %p2451, %s20, 1
        %s2453 = smul.addr %s2452, 32
        %s2454 = smul.addr %s2453, 8
        %s2455 = scalar_lea.vmem %s8, %s2454
      $region64: #{a_call__.1} parent=59 // pred_fallthru
        _
    $region60: #{a_call__.1} parent=5 // pred_fallthru
      _
  $region6: #{a_call__.1} parent=0 // loop_footer
    %s18 = sadd.s32 1, %s14
  $region7: #{a_call__.1} parent=0 // loop_footer_branch
    %13 = sbr.rel target = $region3
  $region8: #{a_call__.1} parent=0 // loop_exit
    _

</llo_original>
